<compile_context>
chip_gen: v7x
topology: tpu7x:2x2x1
jax: 0.10.0
libtpu: 0.0.40
codegen_flags: <defaults>
</compile_context>

<pallas_src>
import functools

import jax
import jax.numpy as jnp
from jax.experimental import pallas as pl
from jax.experimental.pallas import tpu as pltpu


# ----------------------------------------------------------------------------
# helpers
# ----------------------------------------------------------------------------
def _round_up(v, m):
    return (v + m - 1) // m * m


def _pad2d(a, rows, cols, dtype):
    a = a.astype(dtype)
    return jnp.pad(a, ((0, rows - a.shape[0]), (0, cols - a.shape[1])))


def _pick_tile(n):
    """Largest tile in {512, 256, 128} whose padding waste stays <= ~12.5%."""
    base = _round_up(n, 128)
    for t in (512, 256, 128):
        if _round_up(n, t) * 8 <= base * 9:
            return t
    return 128


# ----------------------------------------------------------------------------
# kernels
# ----------------------------------------------------------------------------
def _gcn_hidden_kernel(adj_ref, xw_ref, b1_ref, h1_ref, acc_ref):
    """H1[i] = relu( sum_k adj[i,k] @ XW[k] + b1_folded )."""
    k = pl.program_id(1)

    @pl.when(k == 0)
    def _init():
        acc_ref[...] = jnp.zeros_like(acc_ref)

    acc_ref[...] += jnp.dot(adj_ref[...], xw_ref[...],
                            preferred_element_type=jnp.float32)

    @pl.when(k == pl.num_programs(1) - 1)
    def _finalize():
        h = acc_ref[...] + b1_ref[...]
        h1_ref[...] = jnp.maximum(h, 0.0).astype(h1_ref.dtype)


def _vae_head_kernel(adj_ref, h1_ref, wcat_ref, bcat_ref, eps_ref,
                     mu_ref, std_ref, z_ref, acc_ref):
    """Fused mu/logvar head: pre = relu(adj @ (H1 @ [Wmu|Wvar]) + b); sample z."""
    k = pl.program_id(1)

    @pl.when(k == 0)
    def _init():
        acc_ref[...] = jnp.zeros_like(acc_ref)

    support = jnp.dot(h1_ref[...], wcat_ref[...],
                      preferred_element_type=jnp.float32).astype(jnp.bfloat16)
    acc_ref[...] += jnp.dot(adj_ref[...], support,
                            preferred_element_type=jnp.float32)

    @pl.when(k == pl.num_programs(1) - 1)
    def _finalize():
        o = mu_ref.shape[-1]
        pre = jnp.maximum(acc_ref[...] + bcat_ref[...], 0.0)
        mu = pre[:, :o]
        std = jnp.exp(0.5 * pre[:, o:])          # sqrt(exp(relu(.)))
        mu_ref[...] = mu
        std_ref[...] = std
        z_ref[...] = mu + std * eps_ref[...]


# ----------------------------------------------------------------------------
# one-time preparation (outside the per-call jit): fold BN, pad, cast to bf16
# ----------------------------------------------------------------------------
def vgae_prepare(params, adj, *, tile=None):
    n = adj.shape[0]
    nfeat, nhid = params["w1"].shape
    nout = params["wmu"].shape[1]
    if tile is None:
        tile = _pick_tile(n)

    n_pad = _round_up(n, tile)
    h_pad = _round_up(nhid, 128)
    o_pad = _round_up(nout, 128)

    bn_eps = 1e-5
    scale = params["gamma"] / jnp.sqrt(params["running_var"] + bn_eps)    # (1, nhid)
    w1f = params["w1"] * scale                                            # BN folded into W1
    b1f = (params["b1"] - params["running_mean"]) * scale + params["beta"]

    wcat = jnp.concatenate([_pad2d(params["wmu"], nhid, o_pad, jnp.float32),
                            _pad2d(params["wvar"], nhid, o_pad, jnp.float32)], axis=1)
    bcat = jnp.concatenate([_pad2d(params["bmu"], 1, o_pad, jnp.float32),
                            _pad2d(params["bvar"], 1, o_pad, jnp.float32)], axis=1)

    ops = dict(
        adj=_pad2d(adj, n_pad, n_pad, jnp.bfloat16),        # padded + bf16 ONCE, reused
        w1=_pad2d(w1f, nfeat, h_pad, jnp.bfloat16),          # contraction dim left unpadded
        b1=_pad2d(b1f, 1, h_pad, jnp.float32),
        wcat=_pad2d(wcat, h_pad, 2 * o_pad, jnp.bfloat16),
        bcat=bcat.astype(jnp.float32),
    )
    dims = dict(tile=tile, n=n, nout=nout, n_pad=n_pad, h_pad=h_pad, o_pad=o_pad)
    return ops, dims


# ----------------------------------------------------------------------------
# forward
# ----------------------------------------------------------------------------
@functools.partial(jax.jit, static_argnames=("tile", "nout"))
def _vgae_forward_prepped(ops, x, key, *, tile, nout):
    n = x.shape[0]
    n_pad = ops["adj"].shape[0]
    h_pad = ops["w1"].shape[1]
    o_pad = ops["wcat"].shape[1] // 2
    gi = n_pad // tile
    gk = n_pad // tile

    cparams = pltpu.CompilerParams(
        dimension_semantics=("parallel", "arbitrary"),
    )

    # XW = x @ W1_folded, computed once per call (tiny), bf16 feed for stage 1.
    xw = jnp.dot(x.astype(jnp.bfloat16), ops["w1"],
                 preferred_element_type=jnp.float32).astype(jnp.bfloat16)
    xw = jnp.pad(xw, ((0, n_pad - n), (0, 0)))

    # ---------------- stage 1: hidden GCN layer (BN folded) ----------------
    h1 = pl.pallas_call(
        _gcn_hidden_kernel,
        grid=(gi, gk),
        in_specs=[
            pl.BlockSpec((tile, tile), lambda i, k: (i, k)),     # adj tile
            pl.BlockSpec((tile, h_pad), lambda i, k: (k, 0)),    # XW rows for this k tile
            pl.BlockSpec((1, h_pad), lambda i, k: (0, 0)),       # folded bias (resident)
        ],
        out_specs=pl.BlockSpec((tile, h_pad), lambda i, k: (i, 0)),
        out_shape=jax.ShapeDtypeStruct((n_pad, h_pad), jnp.bfloat16),
        scratch_shapes=[pltpu.VMEM((tile, h_pad), jnp.float32)],
        compiler_params=cparams,
    )(ops["adj"], xw, ops["b1"])

    # ---------------- stage 2: fused mu/logvar head + reparameterized sample ----------------
    eps = jax.random.normal(key, (n_pad, o_pad), jnp.float32)

    mu_p, std_p, z_p = pl.pallas_call(
        _vae_head_kernel,
        grid=(gi, gk),
        in_specs=[
            pl.BlockSpec((tile, tile), lambda i, k: (i, k)),         # adj tile
            pl.BlockSpec((tile, h_pad), lambda i, k: (k, 0)),        # H1 rows for this k tile
            pl.BlockSpec((h_pad, 2 * o_pad), lambda i, k: (0, 0)),   # [Wmu|Wvar] (resident)
            pl.BlockSpec((1, 2 * o_pad), lambda i, k: (0, 0)),       # [bmu|bvar] (resident)
            pl.BlockSpec((tile, o_pad), lambda i, k: (i, 0)),        # eps for this row tile
        ],
        out_specs=(
            pl.BlockSpec((tile, o_pad), lambda i, k: (i, 0)),
            pl.BlockSpec((tile, o_pad), lambda i, k: (i, 0)),
            pl.BlockSpec((tile, o_pad), lambda i, k: (i, 0)),
        ),
        out_shape=(
            jax.ShapeDtypeStruct((n_pad, o_pad), jnp.float32),
            jax.ShapeDtypeStruct((n_pad, o_pad), jnp.float32),
            jax.ShapeDtypeStruct((n_pad, o_pad), jnp.float32),
        ),
        scratch_shapes=[pltpu.VMEM((tile, 2 * o_pad), jnp.float32)],
        compiler_params=cparams,
    )(ops["adj"], h1, ops["wcat"], ops["bcat"], eps)

    # Module returns (mu, var, z) where `var` is the scale (std) fed to Normal(...).rsample().
    return mu_p[:n, :nout], std_p[:n, :nout], z_p[:n, :nout]


def vgae_forward(x, adj, params, key, *, tile=None):
    """Convenience wrapper: one-time prepare + jitted forward."""
    ops, d = vgae_prepare(params, adj, tile=tile)
    return _vgae_forward_prepped(ops, x, key, tile=d["tile"], nout=d["nout"])


# ----------------------------------------------------------------------------
# references + parameter init
# ----------------------------------------------------------------------------
def _reference_forward(x, adj, params, *, tile=None):
    """Pure-JAX reference mirroring the kernel's bf16 operand/intermediate rounding."""
    ops, d = vgae_prepare(params, adj, tile=tile)
    n, nout, n_pad, o_pad = d["n"], d["nout"], d["n_pad"], d["o_pad"]
    f32 = lambda a: a.astype(jnp.float32)
    adj_f = f32(ops["adj"])
    xw = jnp.dot(x.astype(jnp.bfloat16), ops["w1"],
                 preferred_element_type=jnp.float32).astype(jnp.bfloat16)
    xw = jnp.pad(xw, ((0, n_pad - n), (0, 0)))
    h1 = jnp.maximum(adj_f @ f32(xw) + ops["b1"], 0.0).astype(jnp.bfloat16)
    s2 = jnp.dot(h1, ops["wcat"], preferred_element_type=jnp.float32).astype(jnp.bfloat16)
    pre = jnp.maximum(adj_f @ f32(s2) + ops["bcat"], 0.0)
    mu = pre[:, :o_pad]
    std = jnp.exp(0.5 * pre[:, o_pad:])
    return mu[:n, :nout], std[:n, :nout]


def init_params(key, nfeat, nhid, out):
    """Deterministic synthetic parameters (shapes from VGAE.__init__, eval-mode BN stats)."""
    k = jax.random.split(key, 9)
    s1 = 1.0 / jnp.sqrt(jnp.float32(nfeat))
    s2 = 1.0 / jnp.sqrt(jnp.float32(nhid))
    return {
        # GCN.gc1 : GraphConvolution(nfeat, nhid)
        "w1": jax.random.uniform(k[0], (nfeat, nhid), jnp.float32, -s1, s1),
        "b1": jax.random.uniform(k[1], (1, nhid), jnp.float32, -s1, s1),
        # GCN.norm : BatchNorm1d(nhid) — affine + running stats (eval mode)
        "gamma": jax.random.uniform(k[2], (1, nhid), jnp.float32, 0.8, 1.2),
        "beta": 0.1 * jax.random.normal(k[3], (1, nhid), jnp.float32),
        "running_mean": 0.1 * jax.random.normal(k[4], (1, nhid), jnp.float32),
        "running_var": jax.random.uniform(k[5], (1, nhid), jnp.float32, 0.5, 1.5),
        # GCN_VAE.gc1 / gc2 : GraphConvolution(nhid, out)
        "wmu": jax.random.uniform(k[6], (nhid, out), jnp.float32, -s2, s2),
        "bmu": jax.random.uniform(k[7], (1, out), jnp.float32, -s2, s2),
        "wvar": jax.random.uniform(k[8], (nhid, out), jnp.float32, -s2, s2),
        "bvar": jnp.zeros((1, out), jnp.float32),
    }


# ----------------------------------------------------------------------------
# demo / checks
# ----------------------------------------------------------------------------
if __name__ == "__main__":
    N, NFEAT, NHID, OUT = 300, 16, 32, 8          # N deliberately not tile-aligned

    key = jax.random.PRNGKey(0)
    kx, kadj, kparam, keps = jax.random.split(key, 4)

    x = jax.random.normal(kx, (N, NFEAT), jnp.float32)

    # Symmetric, row-normalized dense adjacency with self loops.
    a = (jax.random.uniform(kadj, (N, N)) > 0.9).astype(jnp.float32)
    a = jnp.maximum(a, a.T) + jnp.eye(N, dtype=jnp.float32)
    adj = a / jnp.sum(a, axis=1, keepdims=True)

    params = init_params(kparam, NFEAT, NHID, OUT)

    mu, var, z = vgae_forward(x, adj, params, keps)
    jax.block_until_ready((mu, var, z))

    # Check 1: bit-faithful reference (same bf16 operands / intermediates as the kernel).
    mu_ref, std_ref = _reference_forward(x, adj, params)
    assert jnp.allclose(mu, mu_ref, atol=1e-2, rtol=1e-2), "mu mismatch vs bf16 reference"
    assert jnp.allclose(var, std_ref, atol=1e-2, rtol=1e-2), "std mismatch vs bf16 reference"

    # Check 2: eval-mode PyTorch semantics in plain f32 (looser tolerance for bf16 MXU feeds).
    bn_eps = 1e-5
    h1 = adj @ (x @ params["w1"]) + params["b1"]
    h1 = (h1 - params["running_mean"]) / jnp.sqrt(params["running_var"] + bn_eps) \
         * params["gamma"] + params["beta"]
    h1 = jnp.maximum(h1, 0.0)
    mu_sem = jnp.maximum(adj @ (h1 @ params["wmu"]) + params["bmu"], 0.0)
    v_sem = jnp.maximum(adj @ (h1 @ params["wvar"]) + params["bvar"], 0.0)
    std_sem = jnp.exp(0.5 * v_sem)                 # == torch.exp(var).sqrt()
    assert jnp.allclose(mu, mu_sem, atol=5e-2, rtol=5e-2), "mu mismatch vs f32 semantics"
    assert jnp.allclose(var, std_sem, atol=5e-2, rtol=5e-2), "std mismatch vs f32 semantics"

    # Check 3: z = mu + std * eps with eps ~ N(0, 1).
    eps = (z - mu) / var
    assert bool(jnp.all(jnp.isfinite(z)))
    assert abs(float(jnp.mean(eps))) < 0.25
    assert 0.6 < float(jnp.std(eps)) < 1.4

    print("KERNEL_OK")
</pallas_src>

<mosaic_0001>
module attributes {stable_mosaic.version = 11 : i64} {
  func.func @_gcn_hidden_kernel(%arg0: i32, %arg1: i32, %arg2: memref<128x128xbf16, #tpu.memory_space<vmem>>, %arg3: memref<128x128xbf16, #tpu.memory_space<vmem>>, %arg4: memref<1x128xf32, #tpu.memory_space<vmem>>, %arg5: memref<128x128xbf16, #tpu.memory_space<vmem>>, %arg6: memref<128x128xf32, #tpu.memory_space<vmem>>) attributes {dimension_semantics = [#tpu.dimension_semantics<parallel>, #tpu.dimension_semantics<arbitrary>], iteration_bounds = array<i64: 3, 3>, scalar_prefetch = 0 : i64, scratch_operands = 1 : i64, tpu.core_type = #tpu.core_type<tc>, window_params = [{transform_indices = @transform_0, window_bounds = array<i64: 128, 128>}, {transform_indices = @transform_1, window_bounds = array<i64: 128, 128>}, {pipeline_mode = #tpu.pipeline_mode<synchronous>, transform_indices = @transform_2, window_bounds = array<i64: 1, 128>}, {transform_indices = @transform_3, window_bounds = array<i64: 128, 128>}]} {
    %c0_i32 = arith.constant 0 : i32
    %0 = arith.cmpi eq, %arg1, %c0_i32 : i32
    %1 = arith.extui %0 : i1 to i32
    %c0_i32_0 = arith.constant 0 : i32
    %2 = arith.cmpi ne, %1, %c0_i32_0 : i32
    scf.if %2 {
      %cst_9 = arith.constant 0.000000e+00 : f32
      %12 = vector.broadcast %cst_9 : f32 to vector<128x128xf32>
      %c0_10 = arith.constant 0 : index
      %c0_11 = arith.constant 0 : index
      %13 = vector.load %arg6[%c0_10, %c0_11] : memref<128x128xf32, #tpu.memory_space<vmem>>, vector<128x128xf32>
      tpu.vector_store %arg6[%c0_10, %c0_11], %12 {strides = array<i32>} : memref<128x128xf32, #tpu.memory_space<vmem>>, vector<128x128xf32>,
    } else {
    }
    %c0 = arith.constant 0 : index
    %c0_1 = arith.constant 0 : index
    %3 = vector.load %arg6[%c0, %c0_1] : memref<128x128xf32, #tpu.memory_space<vmem>>, vector<128x128xf32>
    %c0_2 = arith.constant 0 : index
    %c0_3 = arith.constant 0 : index
    %4 = vector.load %arg2[%c0_2, %c0_3] : memref<128x128xbf16, #tpu.memory_space<vmem>>, vector<128x128xbf16>
    %c0_4 = arith.constant 0 : index
    %c0_5 = arith.constant 0 : index
    %5 = vector.load %arg3[%c0_4, %c0_5] : memref<128x128xbf16, #tpu.memory_space<vmem>>, vector<128x128xbf16>
    %cst = arith.constant dense<0.000000e+00> : vector<128x128xf32>
    %6 = tpu.matmul %4, %5, %cst {dimension_numbers = #tpu.dot_dimension_numbers<[1], [0], [0], [1], [0, 0, 1, 1], [], []>} : vector<128x128xbf16>, vector<128x128xbf16>, vector<128x128xf32> -> vector<128x128xf32>
    %7 = arith.addf %3, %6 : vector<128x128xf32>
    %c0_6 = arith.constant 0 : index
    %c0_7 = arith.constant 0 : index
    %8 = vector.load %arg6[%c0_6, %c0_7] : memref<128x128xf32, #tpu.memory_space<vmem>>, vector<128x128xf32>
    tpu.vector_store %arg6[%c0_6, %c0_7], %7 {strides = array<i32>} : memref<128x128xf32, #tpu.memory_space<vmem>>, vector<128x128xf32>,
    %c2_i32 = arith.constant 2 : i32
    %9 = arith.cmpi eq, %arg1, %c2_i32 : i32
    %10 = arith.extui %9 : i1 to i32
    %c0_i32_8 = arith.constant 0 : i32
    %11 = arith.cmpi ne, %10, %c0_i32_8 : i32
    scf.if %11 {
      %c0_9 = arith.constant 0 : index
      %c0_10 = arith.constant 0 : index
      %12 = vector.load %arg6[%c0_9, %c0_10] : memref<128x128xf32, #tpu.memory_space<vmem>>, vector<128x128xf32>
      %c0_11 = arith.constant 0 : index
      %c0_12 = arith.constant 0 : index
      %13 = vector.load %arg4[%c0_11, %c0_12] : memref<1x128xf32, #tpu.memory_space<vmem>>, vector<1x128xf32>
      %14 = vector.broadcast %13 : vector<1x128xf32> to vector<128x128xf32>
      %15 = arith.addf %12, %14 : vector<128x128xf32>
      %cst_13 = arith.constant 0.000000e+00 : f32
      %16 = vector.broadcast %cst_13 : f32 to vector<128x128xf32>
      %17 = arith.maximumf %15, %16 : vector<128x128xf32>
      %18 = arith.truncf %17 : vector<128x128xf32> to vector<128x128xbf16>
      %c0_14 = arith.constant 0 : index
      %c0_15 = arith.constant 0 : index
      %19 = vector.load %arg5[%c0_14, %c0_15] : memref<128x128xbf16, #tpu.memory_space<vmem>>, vector<128x128xbf16>
      tpu.vector_store %arg5[%c0_14, %c0_15], %18 {strides = array<i32>} : memref<128x128xbf16, #tpu.memory_space<vmem>>, vector<128x128xbf16>,
    } else {
    }
    return
  }
  func.func @transform_0(%arg0: i32, %arg1: i32) -> (i32, i32) {
    %c0_i32 = arith.constant 0 : i32
    return %arg0, %arg1 : i32, i32
  }
  func.func @transform_1(%arg0: i32, %arg1: i32) -> (i32, i32) {
    %c0_i32 = arith.constant 0 : i32
    %c0_i32_0 = arith.constant 0 : i32
    return %arg1, %c0_i32 : i32, i32
  }
  func.func @transform_2(%arg0: i32, %arg1: i32) -> (i32, i32) {
    %c0_i32 = arith.constant 0 : i32
    %c0_i32_0 = arith.constant 0 : i32
    %c0_i32_1 = arith.constant 0 : i32
    return %c0_i32, %c0_i32_0 : i32, i32
  }
  func.func @transform_3(%arg0: i32, %arg1: i32) -> (i32, i32) {
    %c0_i32 = arith.constant 0 : i32
    %c0_i32_0 = arith.constant 0 : i32
    return %arg0, %c0_i32 : i32, i32
  }
}

module attributes {stable_mosaic.version = 11 : i64} {
  func.func @_vae_head_kernel(%arg0: i32, %arg1: i32, %arg2: memref<128x128xbf16, #tpu.memory_space<vmem>>, %arg3: memref<128x128xbf16, #tpu.memory_space<vmem>>, %arg4: memref<128x256xbf16, #tpu.memory_space<vmem>>, %arg5: memref<1x256xf32, #tpu.memory_space<vmem>>, %arg6: memref<128x128xf32, #tpu.memory_space<vmem>>, %arg7: memref<128x128xf32, #tpu.memory_space<vmem>>, %arg8: memref<128x128xf32, #tpu.memory_space<vmem>>, %arg9: memref<128x128xf32, #tpu.memory_space<vmem>>, %arg10: memref<128x256xf32, #tpu.memory_space<vmem>>) attributes {dimension_semantics = [#tpu.dimension_semantics<parallel>, #tpu.dimension_semantics<arbitrary>], iteration_bounds = array<i64: 3, 3>, scalar_prefetch = 0 : i64, scratch_operands = 1 : i64, tpu.core_type = #tpu.core_type<tc>, window_params = [{transform_indices = @transform_0, window_bounds = array<i64: 128, 128>}, {transform_indices = @transform_1, window_bounds = array<i64: 128, 128>}, {pipeline_mode = #tpu.pipeline_mode<synchronous>, transform_indices = @transform_2, window_bounds = array<i64: 128, 256>}, {pipeline_mode = #tpu.pipeline_mode<synchronous>, transform_indices = @transform_3, window_bounds = array<i64: 1, 256>}, {transform_indices = @transform_4, window_bounds = array<i64: 128, 128>}, {transform_indices = @transform_5, window_bounds = array<i64: 128, 128>}, {transform_indices = @transform_6, window_bounds = array<i64: 128, 128>}, {transform_indices = @transform_7, window_bounds = array<i64: 128, 128>}]} {
    %c0_i32 = arith.constant 0 : i32
    %0 = arith.cmpi eq, %arg1, %c0_i32 : i32
    %1 = arith.extui %0 : i1 to i32
    %c0_i32_0 = arith.constant 0 : i32
    %2 = arith.cmpi ne, %1, %c0_i32_0 : i32
    scf.if %2 {
      %cst_12 = arith.constant 0.000000e+00 : f32
      %15 = vector.broadcast %cst_12 : f32 to vector<128x256xf32>
      %c0_13 = arith.constant 0 : index
      %c0_14 = arith.constant 0 : index
      %16 = vector.load %arg10[%c0_13, %c0_14] : memref<128x256xf32, #tpu.memory_space<vmem>>, vector<128x256xf32>
      tpu.vector_store %arg10[%c0_13, %c0_14], %15 {strides = array<i32>} : memref<128x256xf32, #tpu.memory_space<vmem>>, vector<128x256xf32>,
    } else {
    }
    %c0 = arith.constant 0 : index
    %c0_1 = arith.constant 0 : index
    %3 = vector.load %arg3[%c0, %c0_1] : memref<128x128xbf16, #tpu.memory_space<vmem>>, vector<128x128xbf16>
    %c0_2 = arith.constant 0 : index
    %c0_3 = arith.constant 0 : index
    %4 = vector.load %arg4[%c0_2, %c0_3] : memref<128x256xbf16, #tpu.memory_space<vmem>>, vector<128x256xbf16>
    %cst = arith.constant dense<0.000000e+00> : vector<128x256xf32>
    %5 = tpu.matmul %3, %4, %cst {dimension_numbers = #tpu.dot_dimension_numbers<[1], [0], [0], [1], [0, 0, 1, 1], [], []>} : vector<128x128xbf16>, vector<128x256xbf16>, vector<128x256xf32> -> vector<128x256xf32>
    %6 = arith.truncf %5 : vector<128x256xf32> to vector<128x256xbf16>
    %c0_4 = arith.constant 0 : index
    %c0_5 = arith.constant 0 : index
    %7 = vector.load %arg10[%c0_4, %c0_5] : memref<128x256xf32, #tpu.memory_space<vmem>>, vector<128x256xf32>
    %c0_6 = arith.constant 0 : index
    %c0_7 = arith.constant 0 : index
    %8 = vector.load %arg2[%c0_6, %c0_7] : memref<128x128xbf16, #tpu.memory_space<vmem>>, vector<128x128xbf16>
    %cst_8 = arith.constant dense<0.000000e+00> : vector<128x256xf32>
    %9 = tpu.matmul %8, %6, %cst_8 {dimension_numbers = #tpu.dot_dimension_numbers<[1], [0], [0], [1], [0, 0, 1, 1], [], []>} : vector<128x128xbf16>, vector<128x256xbf16>, vector<128x256xf32> -> vector<128x256xf32>
    %10 = arith.addf %7, %9 : vector<128x256xf32>
    %c0_9 = arith.constant 0 : index
    %c0_10 = arith.constant 0 : index
    %11 = vector.load %arg10[%c0_9, %c0_10] : memref<128x256xf32, #tpu.memory_space<vmem>>, vector<128x256xf32>
    tpu.vector_store %arg10[%c0_9, %c0_10], %10 {strides = array<i32>} : memref<128x256xf32, #tpu.memory_space<vmem>>, vector<128x256xf32>,
    %c2_i32 = arith.constant 2 : i32
    %12 = arith.cmpi eq, %arg1, %c2_i32 : i32
    %13 = arith.extui %12 : i1 to i32
    %c0_i32_11 = arith.constant 0 : i32
    %14 = arith.cmpi ne, %13, %c0_i32_11 : i32
    scf.if %14 {
      %c0_12 = arith.constant 0 : index
      %c0_13 = arith.constant 0 : index
      %15 = vector.load %arg10[%c0_12, %c0_13] : memref<128x256xf32, #tpu.memory_space<vmem>>, vector<128x256xf32>
      %c0_14 = arith.constant 0 : index
      %c0_15 = arith.constant 0 : index
      %16 = vector.load %arg5[%c0_14, %c0_15] : memref<1x256xf32, #tpu.memory_space<vmem>>, vector<1x256xf32>
      %17 = vector.broadcast %16 : vector<1x256xf32> to vector<128x256xf32>
      %18 = arith.addf %15, %17 : vector<128x256xf32>
      %cst_16 = arith.constant 0.000000e+00 : f32
      %19 = vector.broadcast %cst_16 : f32 to vector<128x256xf32>
      %20 = arith.maximumf %18, %19 : vector<128x256xf32>
      %21 = vector.extract_strided_slice %20 {offsets = [0, 0], sizes = [128, 128], strides = [1, 1]} : vector<128x256xf32> to vector<128x128xf32>
      %22 = vector.extract_strided_slice %20 {offsets = [0, 128], sizes = [128, 128], strides = [1, 1]} : vector<128x256xf32> to vector<128x128xf32>
      %cst_17 = arith.constant 5.000000e-01 : f32
      %23 = vector.broadcast %cst_17 : f32 to vector<128x128xf32>
      %24 = arith.mulf %23, %22 : vector<128x128xf32>
      %25 = math.exp %24 : vector<128x128xf32>
      %c0_18 = arith.constant 0 : index
      %c0_19 = arith.constant 0 : index
      %26 = vector.load %arg7[%c0_18, %c0_19] : memref<128x128xf32, #tpu.memory_space<vmem>>, vector<128x128xf32>
      tpu.vector_store %arg7[%c0_18, %c0_19], %21 {strides = array<i32>} : memref<128x128xf32, #tpu.memory_space<vmem>>, vector<128x128xf32>,
      %c0_20 = arith.constant 0 : index
      %c0_21 = arith.constant 0 : index
      %27 = vector.load %arg8[%c0_20, %c0_21] : memref<128x128xf32, #tpu.memory_space<vmem>>, vector<128x128xf32>
      tpu.vector_store %arg8[%c0_20, %c0_21], %25 {strides = array<i32>} : memref<128x128xf32, #tpu.memory_space<vmem>>, vector<128x128xf32>,
      %c0_22 = arith.constant 0 : index
      %c0_23 = arith.constant 0 : index
      %28 = vector.load %arg6[%c0_22, %c0_23] : memref<128x128xf32, #tpu.memory_space<vmem>>, vector<128x128xf32>
      %29 = arith.mulf %25, %28 : vector<128x128xf32>
      %30 = arith.addf %21, %29 : vector<128x128xf32>
      %c0_24 = arith.constant 0 : index
      %c0_25 = arith.constant 0 : index
      %31 = vector.load %arg9[%c0_24, %c0_25] : memref<128x128xf32, #tpu.memory_space<vmem>>, vector<128x128xf32>
      tpu.vector_store %arg9[%c0_24, %c0_25], %30 {strides = array<i32>} : memref<128x128xf32, #tpu.memory_space<vmem>>, vector<128x128xf32>,
    } else {
    }
    return
  }
  func.func @transform_0(%arg0: i32, %arg1: i32) -> (i32, i32) {
    %c0_i32 = arith.constant 0 : i32
    return %arg0, %arg1 : i32, i32
  }
  func.func @transform_1(%arg0: i32, %arg1: i32) -> (i32, i32) {
    %c0_i32 = arith.constant 0 : i32
    %c0_i32_0 = arith.constant 0 : i32
    return %arg1, %c0_i32 : i32, i32
  }
  func.func @transform_2(%arg0: i32, %arg1: i32) -> (i32, i32) {
    %c0_i32 = arith.constant 0 : i32
    %c0_i32_0 = arith.constant 0 : i32
    %c0_i32_1 = arith.constant 0 : i32
    return %c0_i32, %c0_i32_0 : i32, i32
  }
  func.func @transform_3(%arg0: i32, %arg1: i32) -> (i32, i32) {
    %c0_i32 = arith.constant 0 : i32
    %c0_i32_0 = arith.constant 0 : i32
    %c0_i32_1 = arith.constant 0 : i32
    return %c0_i32, %c0_i32_0 : i32, i32
  }
  func.func @transform_4(%arg0: i32, %arg1: i32) -> (i32, i32) {
    %c0_i32 = arith.constant 0 : i32
    %c0_i32_0 = arith.constant 0 : i32
    return %arg0, %c0_i32 : i32, i32
  }
  func.func @transform_5(%arg0: i32, %arg1: i32) -> (i32, i32) {
    %c0_i32 = arith.constant 0 : i32
    %c0_i32_0 = arith.constant 0 : i32
    return %arg0, %c0_i32 : i32, i32
  }
  func.func @transform_6(%arg0: i32, %arg1: i32) -> (i32, i32) {
    %c0_i32 = arith.constant 0 : i32
    %c0_i32_0 = arith.constant 0 : i32
    return %arg0, %c0_i32 : i32, i32
  }
  func.func @transform_7(%arg0: i32, %arg1: i32) -> (i32, i32) {
    %c0_i32 = arith.constant 0 : i32
    %c0_i32_0 = arith.constant 0 : i32
    return %arg0, %c0_i32 : i32, i32
  }
}

</mosaic_0001>

<llo_original>
// kernel: _vgae_forward_prepped.2
$region0: #{_vgae_forward_prepped.2}
  #allocation0 [shape = 'u32[]', space=smem, size = 0x4, offset = 0x4, fixed_abs, tag = 'smem constant byte address 0x4 - core index']
  #allocation1 [shape = 'u32[144,128]{1,0:T(1,128)}', space=vmem, size = 0x12000, scoped, tag = 'internal scratch']
  #allocation2 [shape = 'f32[128,128]{1,0:T(8,128)}', space=vmem, size = 0x10000, scoped, tag = 'scratch operand']
  %s0 = inlined_call_operand.vmem [shape: bf16[384,384], index: 0, kind: input, shape index: {}]
  %s1 = inlined_call_operand.vmem [shape: bf16[384,128], index: 1, kind: input, shape index: {}]
  %s2 = inlined_call_operand.vmem [shape: f32[1,128], index: 2, kind: input, shape index: {}]
  %s3 = inlined_call_operand.vmem [shape: bf16[384,128], index: 3, kind: output, shape index: {}]
  %s4 = sld [smem:[#allocation0]]
  $region94: #{_vgae_forward_prepped.2} parent=0
    _
  %s6 = ssub.s32 1, %s4
  %s7 = scalar_select 0, %s6, %s4
  $region1: #{_vgae_forward_prepped.2} parent=0
    #allocation3 [shape = 'u8[65536]{0}', space=vmem, size = 0x10000, scoped, tag = 'input window, operand 0']
    loop: start=0, step=1, limit=11
    $region2: #{_vgae_forward_prepped.2} parent=1 // loop_pre_header
      _
    $region3: #{_vgae_forward_prepped.2} parent=1 // loop_header
      %s9 = sphi 0, %s13
      %p10 = scmp.ge.s32.totalorder %s9, 11
      %s16 = sphi 0, %s28
      %s17 = sphi 0, %s24
      %s18 = sphi 0, %s16
      %s19 = sphi 0, %s17
      %s20 = sphi 0, %s18
      %s21 = sphi 0, %s19
      %s33 = sphi 0, %s35
      %s36 = sphi 0, %s33
      %s37 = sphi 0, %s36
      %s53 = sphi 0, %s37
      %s59 = sphi 0, %s61
      %s62 = sphi 0, %s59
      %s63 = sphi 0, %s62
      %s79 = sphi 0, %s63
      %s83 = sphi 0, %s83
      %s85 = sphi 0, %s83
      %s86 = sphi 0, %s85
      %s100 = sphi 0, %s86
      %s106 = sphi 0, %s108
      %s109 = sphi 0, %s106
      %s110 = sphi 0, %s109
      %s126 = sphi 0, %s110
    $region4: #{_vgae_forward_prepped.2} parent=1 // loop_header_branch
      %12 = sbr.rel (%p10) target = $region8
    $region5: #{_vgae_forward_prepped.2} parent=1 // loop_body
      %s14 = ssub.s32 %s9, 1
      %s15 = ssub.s32 %s9, 2
      %s22 = sadd.s32 1, %s17
      %p23 = scmp.ge.s32.totalorder %s22, 3
      %s24 = scalar_select %p23, 0, %s22
      %s25 = sadd.s32 1, %s16
      %s26 = scalar_select %p23, %s25, %s16
      %p27 = scmp.ge.s32.totalorder %s26, 3
      %s28 = scalar_select %p27, 0, %s26
      %s29 = ssub.s32 %s16, %s28
      %s30 = ssub.s32 %s17, %s24
      %s31 = sor.u32 %s29, %s30
      %p32 = scmp.eq.s32.totalorder %s31, 0
      %s34 = sadd.s32 %s33, 1
      %s35 = scalar_select %p32, %s33, %s34
      %p38 = pneg %p32
      %p39 = scmp.eq.s32.totalorder %s9, 8
      %p40 = por %p38, %p39
      %p41 = scmp.ne.s32.totalorder %s33, %s36
      %p42 = scmp.eq.s32.totalorder %s9, 0
      %p43 = por %p41, %p42
      %p44 = scmp.ne.s32.totalorder %s33, %s36
      %p45 = scmp.eq.s32.totalorder %s14, 8
      %p46 = por %p44, %p45
      %p47 = scmp.ne.s32.totalorder %s36, %s37
      %p48 = scmp.eq.s32.totalorder %s14, 0
      %p49 = por %p47, %p48
      %p50 = scmp.ne.s32.totalorder %s36, %s37
      %p51 = scmp.eq.s32.totalorder %s15, 8
      %p52 = por %p50, %p51
      %p54 = scmp.ne.s32.totalorder %s37, %s53
      %p55 = scmp.eq.s32.totalorder %s15, 0
      %p56 = por %p54, %p55
      %s57 = ssub.s32 %s17, %s24
      %p58 = scmp.eq.s32.totalorder %s57, 0
      %s60 = sadd.s32 %s59, 1
      %s61 = scalar_select %p58, %s59, %s60
      %p64 = pneg %p58
      %p65 = scmp.eq.s32.totalorder %s9, 8
      %p66 = por %p64, %p65
      %p67 = scmp.ne.s32.totalorder %s59, %s62
      %p68 = scmp.eq.s32.totalorder %s9, 0
      %p69 = por %p67, %p68
      %p70 = scmp.ne.s32.totalorder %s59, %s62
      %p71 = scmp.eq.s32.totalorder %s14, 8
      %p72 = por %p70, %p71
      %p73 = scmp.ne.s32.totalorder %s62, %s63
      %p74 = scmp.eq.s32.totalorder %s14, 0
      %p75 = por %p73, %p74
      %p76 = scmp.ne.s32.totalorder %s62, %s63
      %p77 = scmp.eq.s32.totalorder %s15, 8
      %p78 = por %p76, %p77
      %p80 = scmp.ne.s32.totalorder %s63, %s79
      %p81 = scmp.eq.s32.totalorder %s15, 0
      %p82 = por %p80, %p81
      %s84 = sadd.s32 %s83, 1
      %p87 = scmp.eq.s32.totalorder %s9, 8
      %p88 = scmp.ne.s32.totalorder %s83, %s85
      %p89 = scmp.eq.s32.totalorder %s9, 0
      %p90 = por %p88, %p89
      %p91 = scmp.ne.s32.totalorder %s83, %s85
      %p92 = scmp.eq.s32.totalorder %s14, 8
      %p93 = por %p91, %p92
      %p94 = scmp.ne.s32.totalorder %s85, %s86
      %p95 = scmp.eq.s32.totalorder %s14, 0
      %p96 = por %p94, %p95
      %p97 = scmp.ne.s32.totalorder %s85, %s86
      %p98 = scmp.eq.s32.totalorder %s15, 8
      %p99 = por %p97, %p98
      %p101 = scmp.ne.s32.totalorder %s86, %s100
      %p102 = scmp.eq.s32.totalorder %s15, 0
      %p103 = por %p101, %p102
      %s104 = ssub.s32 %s16, %s28
      %p105 = scmp.eq.s32.totalorder %s104, 0
      %s107 = sadd.s32 %s106, 1
      %s108 = scalar_select %p105, %s106, %s107
      %p111 = pneg %p105
      %p112 = scmp.eq.s32.totalorder %s9, 8
      %p113 = por %p111, %p112
      %p114 = scmp.ne.s32.totalorder %s106, %s109
      %p115 = scmp.eq.s32.totalorder %s9, 0
      %p116 = por %p114, %p115
      %p117 = scmp.ne.s32.totalorder %s106, %s109
      %p118 = scmp.eq.s32.totalorder %s14, 8
      %p119 = por %p117, %p118
      %p120 = scmp.ne.s32.totalorder %s109, %s110
      %p121 = scmp.eq.s32.totalorder %s14, 0
      %p122 = por %p120, %p121
      %p123 = scmp.ne.s32.totalorder %s109, %s110
      %p124 = scmp.eq.s32.totalorder %s15, 8
      %p125 = por %p123, %p124
      %p127 = scmp.ne.s32.totalorder %s110, %s126
      %p128 = scmp.eq.s32.totalorder %s15, 0
      %p129 = por %p127, %p128
      %p130 = scmp.le.s32.totalorder 1, %s9
      %p131 = scmp.lt.s32.totalorder %s9, 10
      %p132 = pnand %p130, %p131
      %p133 = pneg %p132
      // Predicated region
      $region9: #{_vgae_forward_prepped.2} parent=5 // pred_check
        _
      $region10: #{_vgae_forward_prepped.2} parent=5 // pred_check_branch
        %135 = sbr.rel (%p132) target = $region12
      $region11: #{_vgae_forward_prepped.2} parent=5 // pred_region
        %s136 = ssub.s32 %s9, 1
        // Predicated region
        $region13: #{_vgae_forward_prepped.2} parent=11 // pred_check
          %p137 = pneg %p96
        $region14: #{_vgae_forward_prepped.2} parent=11 // pred_check_branch
          %139 = sbr.rel (%p137) target = $region16
        $region15: #{_vgae_forward_prepped.2} parent=11 // pred_region
          _
        $region16: #{_vgae_forward_prepped.2} parent=11 // pred_fallthru
          _
      $region12: #{_vgae_forward_prepped.2} parent=5 // pred_fallthru
        _
      %p140 = scmp.lt.s32.totalorder %s9, 9
      // Predicated region
      $region17: #{_vgae_forward_prepped.2} parent=5 // pred_check
        %p141 = pneg %p140
      $region18: #{_vgae_forward_prepped.2} parent=5 // pred_check_branch
        %143 = sbr.rel (%p141) target = $region20
      $region19: #{_vgae_forward_prepped.2} parent=5 // pred_region
        // Predicated region
        $region21: #{_vgae_forward_prepped.2} parent=19 // pred_check
          %p144 = pneg %p43
        $region22: #{_vgae_forward_prepped.2} parent=19 // pred_check_branch
          %146 = sbr.rel (%p144) target = $region24
        $region23: #{_vgae_forward_prepped.2} parent=19 // pred_region
          %s147 = sand.u32 %s33, 1
          %s148 = sand.u32 %s33, 1
          %s149 = smul.addr %s148, 64
          %s150 = scalar_lea.vmem [#allocation3], %s149
          %s151 = smul.u32 16, %s16
          %s152 = smul.addr %s151, 3
          %s153 = sadd.s32 %s17, %s152
          %s154 = smul.addr %s153, 4
          %s155 = scalar_lea.vmem %s0, %s154
          // Predicated region
          $region25: #{_vgae_forward_prepped.2} parent=23 // pred_check
            _
          $region26: #{_vgae_forward_prepped.2} parent=23 // pred_check_branch
            %157 = sbr.rel (0) target = $region28
          $region27: #{_vgae_forward_prepped.2} parent=23 // pred_region
            // Predicated region
            $region29: #{_vgae_forward_prepped.2} parent=27 // pred_check
              _
            $region30: #{_vgae_forward_prepped.2} parent=27 // pred_check_branch
              %159 = sbr.rel target = $region32
            $region31: #{_vgae_forward_prepped.2} parent=27 // pred_region
              // Predicated region
              $region44: #{_vgae_forward_prepped.2} parent=31 // pred_check
                _
              $region45: #{_vgae_forward_prepped.2} parent=31 // pred_check_branch
                %204 = sbr.rel (0) target = $region47
              $region46: #{_vgae_forward_prepped.2} parent=31 // pred_region
                loop: start=0, step=1, limit=1
                $region48: #{_vgae_forward_prepped.2} parent=46 // loop_pre_header
                  _
                $region49: #{_vgae_forward_prepped.2} parent=46 // loop_header
                  %s206 = sphi 0, %s210
                  %p207 = scmp.ge.s32.totalorder %s206, 1
                  %s211 = sphi %s155, %s155
                  %s212 = sphi %s150, %s150
                $region50: #{_vgae_forward_prepped.2} parent=46 // loop_header_branch
                  %209 = sbr.rel (%p207) target = $region54
                $region51: #{_vgae_forward_prepped.2} parent=46 // loop_body
                  _
                $region52: #{_vgae_forward_prepped.2} parent=46 // loop_footer
                  %s210 = sadd.s32 1, %s206
                $region53: #{_vgae_forward_prepped.2} parent=46 // loop_footer_branch
                  %205 = sbr.rel target = $region49
                $region54: #{_vgae_forward_prepped.2} parent=46 // loop_exit
                  _
                loop: start=0, step=1, limit=1
                $region55: #{_vgae_forward_prepped.2} parent=46 // loop_pre_header
                  _
                $region56: #{_vgae_forward_prepped.2} parent=46 // loop_header
                  %s215 = sphi 0, %s219
                  %p216 = scmp.ge.s32.totalorder %s215, 1
                  %s220 = sphi %s155, %s155
                  %s221 = sphi %s150, %s150
                $region57: #{_vgae_forward_prepped.2} parent=46 // loop_header_branch
                  %218 = sbr.rel (%p216) target = $region61
                $region58: #{_vgae_forward_prepped.2} parent=46 // loop_body
                  %v222 = vld [vmem:[%s220] sm:$0xf]
                  %223 = vst [vmem:[%s221] sm:$0xf] %v222
                  %v224 = vld [vmem:[%s220 + $0xc] sm:$0xf]
                  %225 = vst [vmem:[%s221 + $0x4] sm:$0xf] %v224
                  %v226 = vld [vmem:[%s220 + $0x18] sm:$0xf]
                  %227 = vst [vmem:[%s221 + $0x8] sm:$0xf] %v226
                  %v228 = vld [vmem:[%s220 + $0x24] sm:$0xf]
                  %229 = vst [vmem:[%s221 + $0xc] sm:$0xf] %v228
                  %v230 = vld [vmem:[%s220 + $0x30] sm:$0xf]
                  %231 = vst [vmem:[%s221 + $0x10] sm:$0xf] %v230
                  %v232 = vld [vmem:[%s220 + $0x3c] sm:$0xf]
                  %233 = vst [vmem:[%s221 + $0x14] sm:$0xf] %v232
                  %v234 = vld [vmem:[%s220 + $0x48] sm:$0xf]
                  %235 = vst [vmem:[%s221 + $0x18] sm:$0xf] %v234
                  %v236 = vld [vmem:[%s220 + $0x54] sm:$0xf]
                  %237 = vst [vmem:[%s221 + $0x1c] sm:$0xf] %v236
                  %v238 = vld [vmem:[%s220 + $0x60] sm:$0xf]
                  %239 = vst [vmem:[%s221 + $0x20] sm:$0xf] %v238
                  %v240 = vld [vmem:[%s220 + $0x6c] sm:$0xf]
                  %241 = vst [vmem:[%s221 + $0x24] sm:$0xf] %v240
                  %v242 = vld [vmem:[%s220 + $0x78] sm:$0xf]
                  %243 = vst [vmem:[%s221 + $0x28] sm:$0xf] %v242
                  %v244 = vld [vmem:[%s220 + $0x84] sm:$0xf]
                  %245 = vst [vmem:[%s221 + $0x2c] sm:$0xf] %v244
                  %v246 = vld [vmem:[%s220 + $0x90] sm:$0xf]
                  %247 = vst [vmem:[%s221 + $0x30] sm:$0xf] %v246
                  %v248 = vld [vmem:[%s220 + $0x9c] sm:$0xf]
                  %249 = vst [vmem:[%s221 + $0x34] sm:$0xf] %v248
                  %v250 = vld [vmem:[%s220 + $0xa8] sm:$0xf]
                  %251 = vst [vmem:[%s221 + $0x38] sm:$0xf] %v250
                  %v252 = vld [vmem:[%s220 + $0xb4] sm:$0xf]
                  %253 = vst [vmem:[%s221 + $0x3c] sm:$0xf] %v252
                $region59: #{_vgae_forward_prepped.2} parent=46 // loop_footer
                  %s219 = sadd.s32 1, %s215
                $region60: #{_vgae_forward_prepped.2} parent=46 // loop_footer_branch
                  %214 = sbr.rel target = $region56
                $region61: #{_vgae_forward_prepped.2} parent=46 // loop_exit
                  _
              $region47: #{_vgae_forward_prepped.2} parent=31 // pred_fallthru
                _
            $region32: #{_vgae_forward_prepped.2} parent=27 // pred_fallthru
              _
            // Predicated region
            $region33: #{_vgae_forward_prepped.2} parent=27 // pred_check
              _
            $region34: #{_vgae_forward_prepped.2} parent=27 // pred_check_branch
              %161 = sbr.rel (0) target = $region36
            $region35: #{_vgae_forward_prepped.2} parent=27 // pred_region
              loop: start=0, step=1, limit=1
              $region37: #{_vgae_forward_prepped.2} parent=35 // loop_pre_header
                _
              $region38: #{_vgae_forward_prepped.2} parent=35 // loop_header
                %s164 = sphi 0, %s168
                %p165 = scmp.ge.s32.totalorder %s164, 1
                %s169 = sphi %s155, %s155
                %s170 = sphi %s150, %s150
              $region39: #{_vgae_forward_prepped.2} parent=35 // loop_header_branch
                %167 = sbr.rel (%p165) target = $region43
              $region40: #{_vgae_forward_prepped.2} parent=35 // loop_body
                %v171 = vld [vmem:[%s169] sm:$0xf]
                %172 = vst [vmem:[%s170] sm:$0xf] %v171
                %v173 = vld [vmem:[%s169 + $0xc] sm:$0xf]
                %174 = vst [vmem:[%s170 + $0x4] sm:$0xf] %v173
                %v175 = vld [vmem:[%s169 + $0x18] sm:$0xf]
                %176 = vst [vmem:[%s170 + $0x8] sm:$0xf] %v175
                %v177 = vld [vmem:[%s169 + $0x24] sm:$0xf]
                %178 = vst [vmem:[%s170 + $0xc] sm:$0xf] %v177
                %v179 = vld [vmem:[%s169 + $0x30] sm:$0xf]
                %180 = vst [vmem:[%s170 + $0x10] sm:$0xf] %v179
                %v181 = vld [vmem:[%s169 + $0x3c] sm:$0xf]
                %182 = vst [vmem:[%s170 + $0x14] sm:$0xf] %v181
                %v183 = vld [vmem:[%s169 + $0x48] sm:$0xf]
                %184 = vst [vmem:[%s170 + $0x18] sm:$0xf] %v183
                %v185 = vld [vmem:[%s169 + $0x54] sm:$0xf]
                %186 = vst [vmem:[%s170 + $0x1c] sm:$0xf] %v185
                %v187 = vld [vmem:[%s169 + $0x60] sm:$0xf]
                %188 = vst [vmem:[%s170 + $0x20] sm:$0xf] %v187
                %v189 = vld [vmem:[%s169 + $0x6c] sm:$0xf]
                %190 = vst [vmem:[%s170 + $0x24] sm:$0xf] %v189
                %v191 = vld [vmem:[%s169 + $0x78] sm:$0xf]
                %192 = vst [vmem:[%s170 + $0x28] sm:$0xf] %v191
                %v193 = vld [vmem:[%s169 + $0x84] sm:$0xf]
                %194 = vst [vmem:[%s170 + $0x2c] sm:$0xf] %v193
                %v195 = vld [vmem:[%s169 + $0x90] sm:$0xf]
                %196 = vst [vmem:[%s170 + $0x30] sm:$0xf] %v195
                %v197 = vld [vmem:[%s169 + $0x9c] sm:$0xf]
                %198 = vst [vmem:[%s170 + $0x34] sm:$0xf] %v197
                %v199 = vld [vmem:[%s169 + $0xa8] sm:$0xf]
                %200 = vst [vmem:[%s170 + $0x38] sm:$0xf] %v199
                %v201 = vld [vmem:[%s169 + $0xb4] sm:$0xf]
                %202 = vst [vmem:[%s170 + $0x3c] sm:$0xf] %v201
              $region41: #{_vgae_forward_prepped.2} parent=35 // loop_footer
                %s168 = sadd.s32 1, %s164
              $region42: #{_vgae_forward_prepped.2} parent=35 // loop_footer_branch
                %163 = sbr.rel target = $region38
              $region43: #{_vgae_forward_prepped.2} parent=35 // loop_exit
                _
            $region36: #{_vgae_forward_prepped.2} parent=27 // pred_fallthru
              _
          $region28: #{_vgae_forward_prepped.2} parent=23 // pred_fallthru
            _
          %254 = vnop
        $region24: #{_vgae_forward_prepped.2} parent=19 // pred_fallthru
          _
        // Predicated region
        $region62: #{_vgae_forward_prepped.2} parent=19 // pred_check
          %p255 = pneg %p69
        $region63: #{_vgae_forward_prepped.2} parent=19 // pred_check_branch
          %257 = sbr.rel (%p255) target = $region65
        $region64: #{_vgae_forward_prepped.2} parent=19 // pred_region
          %s258 = smul.u32 16, %s17
          %p259 = scmp.lt.s32.totalorder %s258, 47
          %s260 = scalar_select %p259, %s258, 47
          %s261 = smul.addr %s260, 4
          %s262 = scalar_lea.vmem %s1, %s261
          %s263 = smul.u32 16, %s17
        $region65: #{_vgae_forward_prepped.2} parent=19 // pred_fallthru
          _
      $region20: #{_vgae_forward_prepped.2} parent=5 // pred_fallthru
        _
      %p264 = scmp.le.s32.totalorder 1, %s9
      %p265 = scmp.lt.s32.totalorder %s9, 10
      %p266 = pnand %p264, %p265
      %p267 = pneg %p266
      // Predicated region
      $region66: #{_vgae_forward_prepped.2} parent=5 // pred_check
        _
      $region67: #{_vgae_forward_prepped.2} parent=5 // pred_check_branch
        %269 = sbr.rel (%p266) target = $region69
      $region68: #{_vgae_forward_prepped.2} parent=5 // pred_region
        %s270 = ssub.s32 %s9, 1
        %s271 = sand.u32 %s36, 1
        %s272 = sand.u32 %s36, 1
        %s273 = smul.addr %s272, 64
        %s274 = scalar_lea.vmem [#allocation3], %s273
        // Predicated region
        $region70: #{_vgae_forward_prepped.2} parent=68 // pred_check
          %p275 = pneg %p49
        $region71: #{_vgae_forward_prepped.2} parent=68 // pred_check_branch
          %277 = sbr.rel (%p275) target = $region73
        $region72: #{_vgae_forward_prepped.2} parent=68 // pred_region
          _
        $region73: #{_vgae_forward_prepped.2} parent=68 // pred_fallthru
          _
        %s278 = sand.u32 %s36, 1
        %s279 = sand.u32 %s36, 1
        %s280 = smul.addr %s279, 64
        %s281 = scalar_lea.vmem [#allocation3], %s280
        %p282 = pneg %p49
        %p283 = pneg %p46
        %s284 = smul.u32 16, %s19
        %p285 = scmp.lt.s32.totalorder %s284, 47
        %s286 = scalar_select %p285, %s284, 47
        %s287 = smul.addr %s286, 4
        %s288 = scalar_lea.vmem %s1, %s287
        %p289 = pneg %p75
        %p290 = pneg %p72
        %p291 = pneg %p96
        %p292 = pneg %p93
        %p293 = pneg %p122
        %p294 = pneg %p119
        %s295 = smul.u32 16, %s18
        %p296 = scmp.lt.s32.totalorder %s295, 47
        %s297 = scalar_select %p296, %s295, 47
        %s298 = smul.addr %s297, 4
        %s299 = scalar_lea.vmem %s3, %s298
        %s300 = smul.u32 16, %s18
        %s301 = smul.u32 16, %s19
        %p302 = scmp.lt.s32.totalorder %s301, 47
        %s303 = scalar_select %p302, %s301, 47
        %s304 = smul.addr %s303, 4
        %s305 = scalar_lea.vmem %s1, %s304
        %s306 = smul.u32 16, %s19
        %s307 = smul.u32 16, %s18
        %p308 = scmp.lt.s32.totalorder %s307, 47
        %s309 = scalar_select %p308, %s307, 47
        %s310 = smul.addr %s309, 4
        %s311 = scalar_lea.vmem %s3, %s310
        %s312 = smul.u32 16, %s18
        %p314 = scmp.eq.s32.totalorder %s19, 0
        // Predicated region
        $region74: #{_vgae_forward_prepped.2} parent=68 // pred_check
          %p315 = pneg %p314
        $region75: #{_vgae_forward_prepped.2} parent=68 // pred_check_branch
          %317 = sbr.rel (%p315) target = $region77
        $region76: #{_vgae_forward_prepped.2} parent=68 // pred_region
          %318 = vst [vmem:[#allocation2] sm:$0xff] 0.0
          %319 = vst [vmem:[#allocation2 + $0x8] sm:$0xff] 0.0
          %320 = vst [vmem:[#allocation2 + $0x10] sm:$0xff] 0.0
          %321 = vst [vmem:[#allocation2 + $0x18] sm:$0xff] 0.0
          %322 = vst [vmem:[#allocation2 + $0x20] sm:$0xff] 0.0
          %323 = vst [vmem:[#allocation2 + $0x28] sm:$0xff] 0.0
          %324 = vst [vmem:[#allocation2 + $0x30] sm:$0xff] 0.0
          %325 = vst [vmem:[#allocation2 + $0x38] sm:$0xff] 0.0
          %326 = vst [vmem:[#allocation2 + $0x40] sm:$0xff] 0.0
          %327 = vst [vmem:[#allocation2 + $0x48] sm:$0xff] 0.0
          %328 = vst [vmem:[#allocation2 + $0x50] sm:$0xff] 0.0
          %329 = vst [vmem:[#allocation2 + $0x58] sm:$0xff] 0.0
          %330 = vst [vmem:[#allocation2 + $0x60] sm:$0xff] 0.0
          %331 = vst [vmem:[#allocation2 + $0x68] sm:$0xff] 0.0
          %332 = vst [vmem:[#allocation2 + $0x70] sm:$0xff] 0.0
          %333 = vst [vmem:[#allocation2 + $0x78] sm:$0xff] 0.0
        $region77: #{_vgae_forward_prepped.2} parent=68 // pred_fallthru
          _
        %v334 = vld [vmem:[#allocation2] sm:$0xff]
        %v335 = vld [vmem:[#allocation2 + $0x8] sm:$0xff]
        %v336 = vld [vmem:[#allocation2 + $0x10] sm:$0xff]
        %v337 = vld [vmem:[#allocation2 + $0x18] sm:$0xff]
        %v338 = vld [vmem:[#allocation2 + $0x20] sm:$0xff]
        %v339 = vld [vmem:[#allocation2 + $0x28] sm:$0xff]
        %v340 = vld [vmem:[#allocation2 + $0x30] sm:$0xff]
        %v341 = vld [vmem:[#allocation2 + $0x38] sm:$0xff]
        %v342 = vld [vmem:[#allocation2 + $0x40] sm:$0xff]
        %v343 = vld [vmem:[#allocation2 + $0x48] sm:$0xff]
        %v344 = vld [vmem:[#allocation2 + $0x50] sm:$0xff]
        %v345 = vld [vmem:[#allocation2 + $0x58] sm:$0xff]
        %v346 = vld [vmem:[#allocation2 + $0x60] sm:$0xff]
        %v347 = vld [vmem:[#allocation2 + $0x68] sm:$0xff]
        %v348 = vld [vmem:[#allocation2 + $0x70] sm:$0xff]
        %v349 = vld [vmem:[#allocation2 + $0x78] sm:$0xff]
        %v350 = vld [vmem:[%s274] sm:$0xf]
        %v351 = vld [vmem:[%s274 + $0x4] sm:$0xf]
        %v352 = vld [vmem:[%s274 + $0x8] sm:$0xf]
        %v353 = vld [vmem:[%s274 + $0xc] sm:$0xf]
        %v354 = vld [vmem:[%s274 + $0x10] sm:$0xf]
        %v355 = vld [vmem:[%s274 + $0x14] sm:$0xf]
        %v356 = vld [vmem:[%s274 + $0x18] sm:$0xf]
        %v357 = vld [vmem:[%s274 + $0x1c] sm:$0xf]
        %v358 = vld [vmem:[%s274 + $0x20] sm:$0xf]
        %v359 = vld [vmem:[%s274 + $0x24] sm:$0xf]
        %v360 = vld [vmem:[%s274 + $0x28] sm:$0xf]
        %v361 = vld [vmem:[%s274 + $0x2c] sm:$0xf]
        %v362 = vld [vmem:[%s274 + $0x30] sm:$0xf]
        %v363 = vld [vmem:[%s274 + $0x34] sm:$0xf]
        %v364 = vld [vmem:[%s274 + $0x38] sm:$0xf]
        %v365 = vld [vmem:[%s274 + $0x3c] sm:$0xf]
        %v366 = vld [vmem:[%s305] sm:$0xf]
        %v367 = vld [vmem:[%s305 + $0x4] sm:$0xf]
        %v368 = vld [vmem:[%s305 + $0x8] sm:$0xf]
        %v369 = vld [vmem:[%s305 + $0xc] sm:$0xf]
        %v370 = vld [vmem:[%s305 + $0x10] sm:$0xf]
        %v371 = vld [vmem:[%s305 + $0x14] sm:$0xf]
        %v372 = vld [vmem:[%s305 + $0x18] sm:$0xf]
        %v373 = vld [vmem:[%s305 + $0x1c] sm:$0xf]
        %v374 = vld [vmem:[%s305 + $0x20] sm:$0xf]
        %v375 = vld [vmem:[%s305 + $0x24] sm:$0xf]
        %v376 = vld [vmem:[%s305 + $0x28] sm:$0xf]
        %v377 = vld [vmem:[%s305 + $0x2c] sm:$0xf]
        %v378 = vld [vmem:[%s305 + $0x30] sm:$0xf]
        %v379 = vld [vmem:[%s305 + $0x34] sm:$0xf]
        %v380 = vld [vmem:[%s305 + $0x38] sm:$0xf]
        %v381 = vld [vmem:[%s305 + $0x3c] sm:$0xf]
        %v398 = vunpack.c.l.b16 %v350
        %v399 = vunpack.c.l.b16 %v351
        %v400 = vunpack.c.l.b16 %v352
        %v401 = vunpack.c.l.b16 %v353
        %v402 = vunpack.c.l.b16 %v354
        %v403 = vunpack.c.l.b16 %v355
        %v404 = vunpack.c.l.b16 %v356
        %v405 = vunpack.c.l.b16 %v357
        %v406 = vunpack.c.l.b16 %v358
        %v407 = vunpack.c.l.b16 %v359
        %v408 = vunpack.c.l.b16 %v360
        %v409 = vunpack.c.l.b16 %v361
        %v410 = vunpack.c.l.b16 %v362
        %v411 = vunpack.c.l.b16 %v363
        %v412 = vunpack.c.l.b16 %v364
        %v413 = vunpack.c.l.b16 %v365
        %v414 = vpack.c.b16 %v399, %v398
        %v415 = vpack.c.b16 %v401, %v400
        %v416 = vpack.c.b16 %v403, %v402
        %v417 = vpack.c.b16 %v405, %v404
        %v418 = vpack.c.b16 %v407, %v406
        %v419 = vpack.c.b16 %v409, %v408
        %v420 = vpack.c.b16 %v411, %v410
        %v421 = vpack.c.b16 %v413, %v412
        %v446 = vunpack.c.l.b16 %v366
        %v447 = vunpack.c.l.b16 %v367
        %v448 = vunpack.c.l.b16 %v368
        %v449 = vunpack.c.l.b16 %v369
        %v450 = vunpack.c.l.b16 %v370
        %v451 = vunpack.c.l.b16 %v371
        %v452 = vunpack.c.l.b16 %v372
        %v453 = vunpack.c.l.b16 %v373
        %v454 = vunpack.c.l.b16 %v374
        %v455 = vunpack.c.l.b16 %v375
        %v456 = vunpack.c.l.b16 %v376
        %v457 = vunpack.c.l.b16 %v377
        %v458 = vunpack.c.l.b16 %v378
        %v459 = vunpack.c.l.b16 %v379
        %v460 = vunpack.c.l.b16 %v380
        %v461 = vunpack.c.l.b16 %v381
        %v462 = vpack.c.b16 %v447, %v446
        %v463 = vpack.c.b16 %v449, %v448
        %v464 = vpack.c.b16 %v451, %v450
        %v465 = vpack.c.b16 %v453, %v452
        %v466 = vpack.c.b16 %v455, %v454
        %v467 = vpack.c.b16 %v457, %v456
        %v468 = vpack.c.b16 %v459, %v458
        %v469 = vpack.c.b16 %v461, %v460
        %478 = vmatprep.subr.bf16.mxu0 0
        %479 = vmatpush1.bf16.msra.mxu0 %v462
        %480 = vmatprep.subr.bf16.mxu0 0
        %481 = vmatpush1.bf16.msra.mxu0 %v463
        %482 = vmatprep.subr.bf16.mxu0 0
        %483 = vmatpush1.bf16.msra.mxu0 %v464
        %484 = vmatprep.subr.bf16.mxu0 0
        %485 = vmatpush1.bf16.msra.mxu0 %v465
        %486 = vmatprep.subr.bf16.mxu0 0
        %487 = vmatpush1.bf16.msra.mxu0 %v466
        %488 = vmatprep.subr.bf16.mxu0 0
        %489 = vmatpush1.bf16.msra.mxu0 %v467
        %490 = vmatprep.subr.bf16.mxu0 0
        %491 = vmatpush1.bf16.msra.mxu0 %v468
        %492 = vmatprep.subr.bf16.mxu0 0
        %493 = vmatpush1.bf16.msra.mxu0 %v469
        %494 = vmatprep.subr.bf16.mxu0 0
        %495 = vmatpush1.bf16.msra.mxu0 0
        %496 = vmatprep.subr.bf16.mxu0 0
        %497 = vmatpush1.bf16.msra.mxu0 0
        %498 = vmatprep.subr.bf16.mxu0 0
        %499 = vmatpush1.bf16.msra.mxu0 0
        %500 = vmatprep.subr.bf16.mxu0 0
        %501 = vmatpush1.bf16.msra.mxu0 0
        %502 = vmatprep.subr.bf16.mxu0 0
        %503 = vmatpush1.bf16.msra.mxu0 0
        %504 = vmatprep.subr.bf16.mxu0 0
        %505 = vmatpush1.bf16.msra.mxu0 0
        %506 = vmatprep.subr.bf16.mxu0 0
        %507 = vmatpush1.bf16.msra.mxu0 0
        %508 = vmatprep.subr.bf16.mxu0 0
        %509 = vmatpush1.bf16.msra.mxu0 0
        %510 = vmatprep.mubr.bf16.mxu0 0
        %511 = vmatmul.mubr.bf16.gmra.mrb[0].mxu0 %v414
        %v512 = vpop.f32.mrb[0].mxu0
        %v513 = vadd.f32 0.0, %v512
        %v514 = vpop.f32.mrb[0].mxu0
        %v515 = vpop.f32.mrb[0].mxu0
        %v516 = vadd.f32 0.0, %v515
        %v517 = vpop.f32.mrb[0].mxu0
        %518 = vmatprep.mubr.bf16.mxu0 0
        %519 = vmatmul.mubr.bf16.gmra.mrb[0].mxu0 %v415
        %v520 = vpop.f32.mrb[0].mxu0
        %v521 = vadd.f32 0.0, %v520
        %v522 = vpop.f32.mrb[0].mxu0
        %v523 = vpop.f32.mrb[0].mxu0
        %v524 = vadd.f32 0.0, %v523
        %v525 = vpop.f32.mrb[0].mxu0
        %526 = vmatprep.mubr.bf16.mxu0 0
        %527 = vmatmul.mubr.bf16.gmra.mrb[0].mxu0 %v416
        %v528 = vpop.f32.mrb[0].mxu0
        %v529 = vadd.f32 0.0, %v528
        %v530 = vpop.f32.mrb[0].mxu0
        %v531 = vpop.f32.mrb[0].mxu0
        %v532 = vadd.f32 0.0, %v531
        %v533 = vpop.f32.mrb[0].mxu0
        %534 = vmatprep.mubr.bf16.mxu0 0
        %535 = vmatmul.mubr.bf16.gmra.mrb[0].mxu0 %v417
        %v536 = vpop.f32.mrb[0].mxu0
        %v537 = vadd.f32 0.0, %v536
        %v538 = vpop.f32.mrb[0].mxu0
        %v539 = vpop.f32.mrb[0].mxu0
        %v540 = vadd.f32 0.0, %v539
        %v541 = vpop.f32.mrb[0].mxu0
        %542 = vmatprep.mubr.bf16.mxu0 0
        %543 = vmatmul.mubr.bf16.gmra.mrb[0].mxu0 %v418
        %v544 = vpop.f32.mrb[0].mxu0
        %v545 = vadd.f32 0.0, %v544
        %v546 = vpop.f32.mrb[0].mxu0
        %v547 = vpop.f32.mrb[0].mxu0
        %v548 = vadd.f32 0.0, %v547
        %v549 = vpop.f32.mrb[0].mxu0
        %550 = vmatprep.mubr.bf16.mxu0 0
        %551 = vmatmul.mubr.bf16.gmra.mrb[0].mxu0 %v419
        %v552 = vpop.f32.mrb[0].mxu0
        %v553 = vadd.f32 0.0, %v552
        %v554 = vpop.f32.mrb[0].mxu0
        %v555 = vpop.f32.mrb[0].mxu0
        %v556 = vadd.f32 0.0, %v555
        %v557 = vpop.f32.mrb[0].mxu0
        %558 = vmatprep.mubr.bf16.mxu0 0
        %559 = vmatmul.mubr.bf16.gmra.mrb[0].mxu0 %v420
        %v560 = vpop.f32.mrb[0].mxu0
        %v561 = vadd.f32 0.0, %v560
        %v562 = vpop.f32.mrb[0].mxu0
        %v563 = vpop.f32.mrb[0].mxu0
        %v564 = vadd.f32 0.0, %v563
        %v565 = vpop.f32.mrb[0].mxu0
        %566 = vmatprep.mubr.bf16.mxu0 0
        %567 = vmatmul.mubr.bf16.gmra.mrb[0].mxu0 %v421
        %v568 = vpop.f32.mrb[0].mxu0
        %v569 = vadd.f32 0.0, %v568
        %v570 = vpop.f32.mrb[0].mxu0
        %v571 = vpop.f32.mrb[0].mxu0
        %v572 = vadd.f32 0.0, %v571
        %v573 = vpop.f32.mrb[0].mxu0
        %574 = vdwg.mxu0
        %v575 = vadd.f32 %v334, %v513
        %v576 = vadd.f32 %v335, %v516
        %v577 = vadd.f32 %v336, %v521
        %v578 = vadd.f32 %v337, %v524
        %v579 = vadd.f32 %v338, %v529
        %v580 = vadd.f32 %v339, %v532
        %v581 = vadd.f32 %v340, %v537
        %v582 = vadd.f32 %v341, %v540
        %v583 = vadd.f32 %v342, %v545
        %v584 = vadd.f32 %v343, %v548
        %v585 = vadd.f32 %v344, %v553
        %v586 = vadd.f32 %v345, %v556
        %v587 = vadd.f32 %v346, %v561
        %v588 = vadd.f32 %v347, %v564
        %v589 = vadd.f32 %v348, %v569
        %v590 = vadd.f32 %v349, %v572
        %591 = vst [vmem:[#allocation2] sm:$0xff] %v575
        %592 = vst [vmem:[#allocation2 + $0x8] sm:$0xff] %v576
        %593 = vst [vmem:[#allocation2 + $0x10] sm:$0xff] %v577
        %594 = vst [vmem:[#allocation2 + $0x18] sm:$0xff] %v578
        %595 = vst [vmem:[#allocation2 + $0x20] sm:$0xff] %v579
        %596 = vst [vmem:[#allocation2 + $0x28] sm:$0xff] %v580
        %597 = vst [vmem:[#allocation2 + $0x30] sm:$0xff] %v581
        %598 = vst [vmem:[#allocation2 + $0x38] sm:$0xff] %v582
        %599 = vst [vmem:[#allocation2 + $0x40] sm:$0xff] %v583
        %600 = vst [vmem:[#allocation2 + $0x48] sm:$0xff] %v584
        %601 = vst [vmem:[#allocation2 + $0x50] sm:$0xff] %v585
        %602 = vst [vmem:[#allocation2 + $0x58] sm:$0xff] %v586
        %603 = vst [vmem:[#allocation2 + $0x60] sm:$0xff] %v587
        %604 = vst [vmem:[#allocation2 + $0x68] sm:$0xff] %v588
        %605 = vst [vmem:[#allocation2 + $0x70] sm:$0xff] %v589
        %606 = vst [vmem:[#allocation2 + $0x78] sm:$0xff] %v590
        %p607 = scmp.eq.s32.totalorder %s19, 2
        // Predicated region
        $region78: #{_vgae_forward_prepped.2} parent=68 // pred_check
          %p608 = pneg %p607
        $region79: #{_vgae_forward_prepped.2} parent=68 // pred_check_branch
          %610 = sbr.rel (%p608) target = $region81
        $region80: #{_vgae_forward_prepped.2} parent=68 // pred_region
          %v611 = vld [vmem:[#allocation2] sm:$0xff]
          %v612 = vld [vmem:[#allocation2 + $0x8] sm:$0xff]
          %v613 = vld [vmem:[#allocation2 + $0x10] sm:$0xff]
          %v614 = vld [vmem:[#allocation2 + $0x18] sm:$0xff]
          %v615 = vld [vmem:[#allocation2 + $0x20] sm:$0xff]
          %v616 = vld [vmem:[#allocation2 + $0x28] sm:$0xff]
          %v617 = vld [vmem:[#allocation2 + $0x30] sm:$0xff]
          %v618 = vld [vmem:[#allocation2 + $0x38] sm:$0xff]
          %v619 = vld [vmem:[#allocation2 + $0x40] sm:$0xff]
          %v620 = vld [vmem:[#allocation2 + $0x48] sm:$0xff]
          %v621 = vld [vmem:[#allocation2 + $0x50] sm:$0xff]
          %v622 = vld [vmem:[#allocation2 + $0x58] sm:$0xff]
          %v623 = vld [vmem:[#allocation2 + $0x60] sm:$0xff]
          %v624 = vld [vmem:[#allocation2 + $0x68] sm:$0xff]
          %v625 = vld [vmem:[#allocation2 + $0x70] sm:$0xff]
          %v626 = vld [vmem:[#allocation2 + $0x78] sm:$0xff]
          %v627 = vld [vmem:[%s2] sm:$0x1]
          %v629 = vlaneseq
          %v630 = vshrl.u32 %v629, 7
          %v631 = vsub.s32 0, %v630
          %v632 = vrot.slane %v627, %v631
          %v634 = vadd.f32 %v611, %v632
          %v635 = vadd.f32 %v612, %v632
          %v636 = vadd.f32 %v613, %v632
          %v637 = vadd.f32 %v614, %v632
          %v638 = vadd.f32 %v615, %v632
          %v639 = vadd.f32 %v616, %v632
          %v640 = vadd.f32 %v617, %v632
          %v641 = vadd.f32 %v618, %v632
          %v642 = vadd.f32 %v619, %v632
          %v643 = vadd.f32 %v620, %v632
          %v644 = vadd.f32 %v621, %v632
          %v645 = vadd.f32 %v622, %v632
          %v646 = vadd.f32 %v623, %v632
          %v647 = vadd.f32 %v624, %v632
          %v648 = vadd.f32 %v625, %v632
          %v649 = vadd.f32 %v626, %v632
          %v650 = vmax.f32 %v634, 0.0
          %v651 = vmax.f32 %v635, 0.0
          %v652 = vmax.f32 %v636, 0.0
          %v653 = vmax.f32 %v637, 0.0
          %v654 = vmax.f32 %v638, 0.0
          %v655 = vmax.f32 %v639, 0.0
          %v656 = vmax.f32 %v640, 0.0
          %v657 = vmax.f32 %v641, 0.0
          %v658 = vmax.f32 %v642, 0.0
          %v659 = vmax.f32 %v643, 0.0
          %v660 = vmax.f32 %v644, 0.0
          %v661 = vmax.f32 %v645, 0.0
          %v662 = vmax.f32 %v646, 0.0
          %v663 = vmax.f32 %v647, 0.0
          %v664 = vmax.f32 %v648, 0.0
          %v665 = vmax.f32 %v649, 0.0
          %v666 = vpack.c.bf16 %v651, %v650
          %v667 = vpack.c.bf16 %v653, %v652
          %v668 = vpack.c.bf16 %v655, %v654
          %v669 = vpack.c.bf16 %v657, %v656
          %v670 = vpack.c.bf16 %v659, %v658
          %v671 = vpack.c.bf16 %v661, %v660
          %v672 = vpack.c.bf16 %v663, %v662
          %v673 = vpack.c.bf16 %v665, %v664
          %v682 = vunpack.c.l.b16 %v666
          %v683 = vunpack.c.h.b16 %v666
          %v684 = vunpack.c.l.b16 %v667
          %v685 = vunpack.c.h.b16 %v667
          %v686 = vunpack.c.l.b16 %v668
          %v687 = vunpack.c.h.b16 %v668
          %v688 = vunpack.c.l.b16 %v669
          %v689 = vunpack.c.h.b16 %v669
          %v690 = vunpack.c.l.b16 %v670
          %v691 = vunpack.c.h.b16 %v670
          %v692 = vunpack.c.l.b16 %v671
          %v693 = vunpack.c.h.b16 %v671
          %v694 = vunpack.c.l.b16 %v672
          %v695 = vunpack.c.h.b16 %v672
          %v696 = vunpack.c.l.b16 %v673
          %v697 = vunpack.c.h.b16 %v673
          %v698 = vpack.c.b16 %v682, %v682
          %v699 = vpack.c.b16 %v683, %v683
          %v700 = vpack.c.b16 %v684, %v684
          %v701 = vpack.c.b16 %v685, %v685
          %v702 = vpack.c.b16 %v686, %v686
          %v703 = vpack.c.b16 %v687, %v687
          %v704 = vpack.c.b16 %v688, %v688
          %v705 = vpack.c.b16 %v689, %v689
          %v706 = vpack.c.b16 %v690, %v690
          %v707 = vpack.c.b16 %v691, %v691
          %v708 = vpack.c.b16 %v692, %v692
          %v709 = vpack.c.b16 %v693, %v693
          %v710 = vpack.c.b16 %v694, %v694
          %v711 = vpack.c.b16 %v695, %v695
          %v712 = vpack.c.b16 %v696, %v696
          %v713 = vpack.c.b16 %v697, %v697
          %730 = vst [vmem:[%s311] sm:$0xf] %v698
          %731 = vst [vmem:[%s311 + $0x4] sm:$0xf] %v699
          %732 = vst [vmem:[%s311 + $0x8] sm:$0xf] %v700
          %733 = vst [vmem:[%s311 + $0xc] sm:$0xf] %v701
          %734 = vst [vmem:[%s311 + $0x10] sm:$0xf] %v702
          %735 = vst [vmem:[%s311 + $0x14] sm:$0xf] %v703
          %736 = vst [vmem:[%s311 + $0x18] sm:$0xf] %v704
          %737 = vst [vmem:[%s311 + $0x1c] sm:$0xf] %v705
          %738 = vst [vmem:[%s311 + $0x20] sm:$0xf] %v706
          %739 = vst [vmem:[%s311 + $0x24] sm:$0xf] %v707
          %740 = vst [vmem:[%s311 + $0x28] sm:$0xf] %v708
          %741 = vst [vmem:[%s311 + $0x2c] sm:$0xf] %v709
          %742 = vst [vmem:[%s311 + $0x30] sm:$0xf] %v710
          %743 = vst [vmem:[%s311 + $0x34] sm:$0xf] %v711
          %744 = vst [vmem:[%s311 + $0x38] sm:$0xf] %v712
          %745 = vst [vmem:[%s311 + $0x3c] sm:$0xf] %v713
        $region81: #{_vgae_forward_prepped.2} parent=68 // pred_fallthru
          _
        %s746 = smul.u32 16, %s18
        %p747 = scmp.lt.s32.totalorder %s746, 47
        %s748 = scalar_select %p747, %s746, 47
        %s749 = smul.addr %s748, 4
        %s750 = scalar_lea.vmem %s3, %s749
        // Predicated region
        $region82: #{_vgae_forward_prepped.2} parent=68 // pred_check
          %p751 = pneg %p119
        $region83: #{_vgae_forward_prepped.2} parent=68 // pred_check_branch
          %753 = sbr.rel (%p751) target = $region85
        $region84: #{_vgae_forward_prepped.2} parent=68 // pred_region
          %s754 = smul.u32 16, %s18
        $region85: #{_vgae_forward_prepped.2} parent=68 // pred_fallthru
          _
      $region69: #{_vgae_forward_prepped.2} parent=5 // pred_fallthru
        _
      %p755 = scmp.le.s32.totalorder 2, %s9
      // Predicated region
      $region86: #{_vgae_forward_prepped.2} parent=5 // pred_check
        %p756 = pneg %p755
      $region87: #{_vgae_forward_prepped.2} parent=5 // pred_check_branch
        %758 = sbr.rel (%p756) target = $region89
      $region88: #{_vgae_forward_prepped.2} parent=5 // pred_region
        %s759 = ssub.s32 %s9, 2
        // Predicated region
        $region90: #{_vgae_forward_prepped.2} parent=88 // pred_check
          %p760 = pneg %p125
        $region91: #{_vgae_forward_prepped.2} parent=88 // pred_check_branch
          %762 = sbr.rel (%p760) target = $region93
        $region92: #{_vgae_forward_prepped.2} parent=88 // pred_region
          %s763 = smul.u32 16, %s20
          %p764 = scmp.lt.s32.totalorder %s763, 47
          %s765 = scalar_select %p764, %s763, 47
          %s766 = smul.addr %s765, 4
          %s767 = scalar_lea.vmem %s3, %s766
        $region93: #{_vgae_forward_prepped.2} parent=88 // pred_fallthru
          _
      $region89: #{_vgae_forward_prepped.2} parent=5 // pred_fallthru
        _
    $region6: #{_vgae_forward_prepped.2} parent=1 // loop_footer
      %s13 = sadd.s32 1, %s9
    $region7: #{_vgae_forward_prepped.2} parent=1 // loop_footer_branch
      %8 = sbr.rel target = $region3
    $region8: #{_vgae_forward_prepped.2} parent=1 // loop_exit
      _

// kernel: _vgae_forward_prepped.3
$region0: #{_vgae_forward_prepped.3}
  #allocation0 [shape = 'u32[]', space=smem, size = 0x4, offset = 0x4, fixed_abs, tag = 'smem constant byte address 0x4 - core index']
  #allocation1 [shape = 'u32[144,128]{1,0:T(1,128)}', space=vmem, size = 0x12000, scoped, tag = 'internal scratch']
  #allocation2 [shape = 'f32[128,256]{1,0:T(8,128)}', space=vmem, size = 0x20000, scoped, tag = 'scratch operand']
  %s0 = inlined_call_operand.vmem [shape: bf16[384,384], index: 0, kind: input, shape index: {}]
  %s1 = inlined_call_operand.vmem [shape: bf16[384,128], index: 1, kind: input, shape index: {}]
  %s2 = inlined_call_operand.vmem [shape: bf16[128,256], index: 2, kind: input, shape index: {}]
  %s3 = inlined_call_operand.vmem [shape: f32[1,256], index: 3, kind: input, shape index: {}]
  %s4 = inlined_call_operand.vmem [shape: f32[384,128], index: 4, kind: input, shape index: {}]
  %s5 = inlined_call_operand.vmem [shape: f32[384,128], index: 5, kind: output, shape index: {0}]
  %s6 = inlined_call_operand.vmem [shape: f32[384,128], index: 6, kind: output, shape index: {1}]
  %s7 = inlined_call_operand.vmem [shape: f32[384,128], index: 7, kind: output, shape index: {2}]
  %8 = xla_tuple %s5, %s6, %s7
  %s9 = sld [smem:[#allocation0]]
  $region118: #{_vgae_forward_prepped.3} parent=0
    _
  %s11 = ssub.s32 1, %s9
  %s12 = scalar_select 0, %s11, %s9
  $region1: #{_vgae_forward_prepped.3} parent=0
    #allocation3 [shape = 'u8[65536]{0}', space=vmem, size = 0x10000, scoped, tag = 'input window, operand 0']
    loop: start=0, step=1, limit=11
    $region2: #{_vgae_forward_prepped.3} parent=1 // loop_pre_header
      _
    $region3: #{_vgae_forward_prepped.3} parent=1 // loop_header
      %s14 = sphi 0, %s18
      %p15 = scmp.ge.s32.totalorder %s14, 11
      %s21 = sphi 0, %s33
      %s22 = sphi 0, %s29
      %s23 = sphi 0, %s21
      %s24 = sphi 0, %s22
      %s25 = sphi 0, %s23
      %s26 = sphi 0, %s24
      %s38 = sphi 0, %s40
      %s41 = sphi 0, %s38
      %s42 = sphi 0, %s41
      %s58 = sphi 0, %s42
      %s64 = sphi 0, %s66
      %s67 = sphi 0, %s64
      %s68 = sphi 0, %s67
      %s84 = sphi 0, %s68
      %s88 = sphi 0, %s88
      %s90 = sphi 0, %s88
      %s91 = sphi 0, %s90
      %s105 = sphi 0, %s91
      %s109 = sphi 0, %s109
      %s111 = sphi 0, %s109
      %s112 = sphi 0, %s111
      %s126 = sphi 0, %s112
      %s132 = sphi 0, %s134
      %s135 = sphi 0, %s132
      %s136 = sphi 0, %s135
      %s152 = sphi 0, %s136
      %s158 = sphi 0, %s160
      %s161 = sphi 0, %s158
      %s162 = sphi 0, %s161
      %s178 = sphi 0, %s162
      %s184 = sphi 0, %s186
      %s187 = sphi 0, %s184
      %s188 = sphi 0, %s187
      %s204 = sphi 0, %s188
      %s210 = sphi 0, %s212
      %s213 = sphi 0, %s210
      %s214 = sphi 0, %s213
      %s230 = sphi 0, %s214
    $region4: #{_vgae_forward_prepped.3} parent=1 // loop_header_branch
      %17 = sbr.rel (%p15) target = $region8
    $region5: #{_vgae_forward_prepped.3} parent=1 // loop_body
      %s19 = ssub.s32 %s14, 1
      %s20 = ssub.s32 %s14, 2
      %s27 = sadd.s32 1, %s22
      %p28 = scmp.ge.s32.totalorder %s27, 3
      %s29 = scalar_select %p28, 0, %s27
      %s30 = sadd.s32 1, %s21
      %s31 = scalar_select %p28, %s30, %s21
      %p32 = scmp.ge.s32.totalorder %s31, 3
      %s33 = scalar_select %p32, 0, %s31
      %s34 = ssub.s32 %s21, %s33
      %s35 = ssub.s32 %s22, %s29
      %s36 = sor.u32 %s34, %s35
      %p37 = scmp.eq.s32.totalorder %s36, 0
      %s39 = sadd.s32 %s38, 1
      %s40 = scalar_select %p37, %s38, %s39
      %p43 = pneg %p37
      %p44 = scmp.eq.s32.totalorder %s14, 8
      %p45 = por %p43, %p44
      %p46 = scmp.ne.s32.totalorder %s38, %s41
      %p47 = scmp.eq.s32.totalorder %s14, 0
      %p48 = por %p46, %p47
      %p49 = scmp.ne.s32.totalorder %s38, %s41
      %p50 = scmp.eq.s32.totalorder %s19, 8
      %p51 = por %p49, %p50
      %p52 = scmp.ne.s32.totalorder %s41, %s42
      %p53 = scmp.eq.s32.totalorder %s19, 0
      %p54 = por %p52, %p53
      %p55 = scmp.ne.s32.totalorder %s41, %s42
      %p56 = scmp.eq.s32.totalorder %s20, 8
      %p57 = por %p55, %p56
      %p59 = scmp.ne.s32.totalorder %s42, %s58
      %p60 = scmp.eq.s32.totalorder %s20, 0
      %p61 = por %p59, %p60
      %s62 = ssub.s32 %s22, %s29
      %p63 = scmp.eq.s32.totalorder %s62, 0
      %s65 = sadd.s32 %s64, 1
      %s66 = scalar_select %p63, %s64, %s65
      %p69 = pneg %p63
      %p70 = scmp.eq.s32.totalorder %s14, 8
      %p71 = por %p69, %p70
      %p72 = scmp.ne.s32.totalorder %s64, %s67
      %p73 = scmp.eq.s32.totalorder %s14, 0
      %p74 = por %p72, %p73
      %p75 = scmp.ne.s32.totalorder %s64, %s67
      %p76 = scmp.eq.s32.totalorder %s19, 8
      %p77 = por %p75, %p76
      %p78 = scmp.ne.s32.totalorder %s67, %s68
      %p79 = scmp.eq.s32.totalorder %s19, 0
      %p80 = por %p78, %p79
      %p81 = scmp.ne.s32.totalorder %s67, %s68
      %p82 = scmp.eq.s32.totalorder %s20, 8
      %p83 = por %p81, %p82
      %p85 = scmp.ne.s32.totalorder %s68, %s84
      %p86 = scmp.eq.s32.totalorder %s20, 0
      %p87 = por %p85, %p86
      %s89 = sadd.s32 %s88, 1
      %p92 = scmp.eq.s32.totalorder %s14, 8
      %p93 = scmp.ne.s32.totalorder %s88, %s90
      %p94 = scmp.eq.s32.totalorder %s14, 0
      %p95 = por %p93, %p94
      %p96 = scmp.ne.s32.totalorder %s88, %s90
      %p97 = scmp.eq.s32.totalorder %s19, 8
      %p98 = por %p96, %p97
      %p99 = scmp.ne.s32.totalorder %s90, %s91
      %p100 = scmp.eq.s32.totalorder %s19, 0
      %p101 = por %p99, %p100
      %p102 = scmp.ne.s32.totalorder %s90, %s91
      %p103 = scmp.eq.s32.totalorder %s20, 8
      %p104 = por %p102, %p103
      %p106 = scmp.ne.s32.totalorder %s91, %s105
      %p107 = scmp.eq.s32.totalorder %s20, 0
      %p108 = por %p106, %p107
      %s110 = sadd.s32 %s109, 1
      %p113 = scmp.eq.s32.totalorder %s14, 8
      %p114 = scmp.ne.s32.totalorder %s109, %s111
      %p115 = scmp.eq.s32.totalorder %s14, 0
      %p116 = por %p114, %p115
      %p117 = scmp.ne.s32.totalorder %s109, %s111
      %p118 = scmp.eq.s32.totalorder %s19, 8
      %p119 = por %p117, %p118
      %p120 = scmp.ne.s32.totalorder %s111, %s112
      %p121 = scmp.eq.s32.totalorder %s19, 0
      %p122 = por %p120, %p121
      %p123 = scmp.ne.s32.totalorder %s111, %s112
      %p124 = scmp.eq.s32.totalorder %s20, 8
      %p125 = por %p123, %p124
      %p127 = scmp.ne.s32.totalorder %s112, %s126
      %p128 = scmp.eq.s32.totalorder %s20, 0
      %p129 = por %p127, %p128
      %s130 = ssub.s32 %s21, %s33
      %p131 = scmp.eq.s32.totalorder %s130, 0
      %s133 = sadd.s32 %s132, 1
      %s134 = scalar_select %p131, %s132, %s133
      %p137 = pneg %p131
      %p138 = scmp.eq.s32.totalorder %s14, 8
      %p139 = por %p137, %p138
      %p140 = scmp.ne.s32.totalorder %s132, %s135
      %p141 = scmp.eq.s32.totalorder %s14, 0
      %p142 = por %p140, %p141
      %p143 = scmp.ne.s32.totalorder %s132, %s135
      %p144 = scmp.eq.s32.totalorder %s19, 8
      %p145 = por %p143, %p144
      %p146 = scmp.ne.s32.totalorder %s135, %s136
      %p147 = scmp.eq.s32.totalorder %s19, 0
      %p148 = por %p146, %p147
      %p149 = scmp.ne.s32.totalorder %s135, %s136
      %p150 = scmp.eq.s32.totalorder %s20, 8
      %p151 = por %p149, %p150
      %p153 = scmp.ne.s32.totalorder %s136, %s152
      %p154 = scmp.eq.s32.totalorder %s20, 0
      %p155 = por %p153, %p154
      %s156 = ssub.s32 %s21, %s33
      %p157 = scmp.eq.s32.totalorder %s156, 0
      %s159 = sadd.s32 %s158, 1
      %s160 = scalar_select %p157, %s158, %s159
      %p163 = pneg %p157
      %p164 = scmp.eq.s32.totalorder %s14, 8
      %p165 = por %p163, %p164
      %p166 = scmp.ne.s32.totalorder %s158, %s161
      %p167 = scmp.eq.s32.totalorder %s14, 0
      %p168 = por %p166, %p167
      %p169 = scmp.ne.s32.totalorder %s158, %s161
      %p170 = scmp.eq.s32.totalorder %s19, 8
      %p171 = por %p169, %p170
      %p172 = scmp.ne.s32.totalorder %s161, %s162
      %p173 = scmp.eq.s32.totalorder %s19, 0
      %p174 = por %p172, %p173
      %p175 = scmp.ne.s32.totalorder %s161, %s162
      %p176 = scmp.eq.s32.totalorder %s20, 8
      %p177 = por %p175, %p176
      %p179 = scmp.ne.s32.totalorder %s162, %s178
      %p180 = scmp.eq.s32.totalorder %s20, 0
      %p181 = por %p179, %p180
      %s182 = ssub.s32 %s21, %s33
      %p183 = scmp.eq.s32.totalorder %s182, 0
      %s185 = sadd.s32 %s184, 1
      %s186 = scalar_select %p183, %s184, %s185
      %p189 = pneg %p183
      %p190 = scmp.eq.s32.totalorder %s14, 8
      %p191 = por %p189, %p190
      %p192 = scmp.ne.s32.totalorder %s184, %s187
      %p193 = scmp.eq.s32.totalorder %s14, 0
      %p194 = por %p192, %p193
      %p195 = scmp.ne.s32.totalorder %s184, %s187
      %p196 = scmp.eq.s32.totalorder %s19, 8
      %p197 = por %p195, %p196
      %p198 = scmp.ne.s32.totalorder %s187, %s188
      %p199 = scmp.eq.s32.totalorder %s19, 0
      %p200 = por %p198, %p199
      %p201 = scmp.ne.s32.totalorder %s187, %s188
      %p202 = scmp.eq.s32.totalorder %s20, 8
      %p203 = por %p201, %p202
      %p205 = scmp.ne.s32.totalorder %s188, %s204
      %p206 = scmp.eq.s32.totalorder %s20, 0
      %p207 = por %p205, %p206
      %s208 = ssub.s32 %s21, %s33
      %p209 = scmp.eq.s32.totalorder %s208, 0
      %s211 = sadd.s32 %s210, 1
      %s212 = scalar_select %p209, %s210, %s211
      %p215 = pneg %p209
      %p216 = scmp.eq.s32.totalorder %s14, 8
      %p217 = por %p215, %p216
      %p218 = scmp.ne.s32.totalorder %s210, %s213
      %p219 = scmp.eq.s32.totalorder %s14, 0
      %p220 = por %p218, %p219
      %p221 = scmp.ne.s32.totalorder %s210, %s213
      %p222 = scmp.eq.s32.totalorder %s19, 8
      %p223 = por %p221, %p222
      %p224 = scmp.ne.s32.totalorder %s213, %s214
      %p225 = scmp.eq.s32.totalorder %s19, 0
      %p226 = por %p224, %p225
      %p227 = scmp.ne.s32.totalorder %s213, %s214
      %p228 = scmp.eq.s32.totalorder %s20, 8
      %p229 = por %p227, %p228
      %p231 = scmp.ne.s32.totalorder %s214, %s230
      %p232 = scmp.eq.s32.totalorder %s20, 0
      %p233 = por %p231, %p232
      %p234 = scmp.le.s32.totalorder 1, %s14
      %p235 = scmp.lt.s32.totalorder %s14, 10
      %p236 = pnand %p234, %p235
      %p237 = pneg %p236
      // Predicated region
      $region9: #{_vgae_forward_prepped.3} parent=5 // pred_check
        _
      $region10: #{_vgae_forward_prepped.3} parent=5 // pred_check_branch
        %239 = sbr.rel (%p236) target = $region12
      $region11: #{_vgae_forward_prepped.3} parent=5 // pred_region
        %s240 = ssub.s32 %s14, 1
        // Predicated region
        $region13: #{_vgae_forward_prepped.3} parent=11 // pred_check
          %p241 = pneg %p101
        $region14: #{_vgae_forward_prepped.3} parent=11 // pred_check_branch
          %243 = sbr.rel (%p241) target = $region16
        $region15: #{_vgae_forward_prepped.3} parent=11 // pred_region
          _
        $region16: #{_vgae_forward_prepped.3} parent=11 // pred_fallthru
          _
        // Predicated region
        $region17: #{_vgae_forward_prepped.3} parent=11 // pred_check
          %p244 = pneg %p122
        $region18: #{_vgae_forward_prepped.3} parent=11 // pred_check_branch
          %246 = sbr.rel (%p244) target = $region20
        $region19: #{_vgae_forward_prepped.3} parent=11 // pred_region
          _
        $region20: #{_vgae_forward_prepped.3} parent=11 // pred_fallthru
          _
      $region12: #{_vgae_forward_prepped.3} parent=5 // pred_fallthru
        _
      %p247 = scmp.lt.s32.totalorder %s14, 9
      // Predicated region
      $region21: #{_vgae_forward_prepped.3} parent=5 // pred_check
        %p248 = pneg %p247
      $region22: #{_vgae_forward_prepped.3} parent=5 // pred_check_branch
        %250 = sbr.rel (%p248) target = $region24
      $region23: #{_vgae_forward_prepped.3} parent=5 // pred_region
        // Predicated region
        $region25: #{_vgae_forward_prepped.3} parent=23 // pred_check
          %p251 = pneg %p48
        $region26: #{_vgae_forward_prepped.3} parent=23 // pred_check_branch
          %253 = sbr.rel (%p251) target = $region28
        $region27: #{_vgae_forward_prepped.3} parent=23 // pred_region
          %s254 = sand.u32 %s38, 1
          %s255 = sand.u32 %s38, 1
          %s256 = smul.addr %s255, 64
          %s257 = scalar_lea.vmem [#allocation3], %s256
          %s258 = smul.u32 16, %s21
          %s259 = smul.addr %s258, 3
          %s260 = sadd.s32 %s22, %s259
          %s261 = smul.addr %s260, 4
          %s262 = scalar_lea.vmem %s0, %s261
          // Predicated region
          $region29: #{_vgae_forward_prepped.3} parent=27 // pred_check
            _
          $region30: #{_vgae_forward_prepped.3} parent=27 // pred_check_branch
            %264 = sbr.rel (0) target = $region32
          $region31: #{_vgae_forward_prepped.3} parent=27 // pred_region
            // Predicated region
            $region33: #{_vgae_forward_prepped.3} parent=31 // pred_check
              _
            $region34: #{_vgae_forward_prepped.3} parent=31 // pred_check_branch
              %266 = sbr.rel target = $region36
            $region35: #{_vgae_forward_prepped.3} parent=31 // pred_region
              // Predicated region
              $region48: #{_vgae_forward_prepped.3} parent=35 // pred_check
                _
              $region49: #{_vgae_forward_prepped.3} parent=35 // pred_check_branch
                %311 = sbr.rel (0) target = $region51
              $region50: #{_vgae_forward_prepped.3} parent=35 // pred_region
                loop: start=0, step=1, limit=1
                $region52: #{_vgae_forward_prepped.3} parent=50 // loop_pre_header
                  _
                $region53: #{_vgae_forward_prepped.3} parent=50 // loop_header
                  %s313 = sphi 0, %s317
                  %p314 = scmp.ge.s32.totalorder %s313, 1
                  %s318 = sphi %s262, %s262
                  %s319 = sphi %s257, %s257
                $region54: #{_vgae_forward_prepped.3} parent=50 // loop_header_branch
                  %316 = sbr.rel (%p314) target = $region58
                $region55: #{_vgae_forward_prepped.3} parent=50 // loop_body
                  _
                $region56: #{_vgae_forward_prepped.3} parent=50 // loop_footer
                  %s317 = sadd.s32 1, %s313
                $region57: #{_vgae_forward_prepped.3} parent=50 // loop_footer_branch
                  %312 = sbr.rel target = $region53
                $region58: #{_vgae_forward_prepped.3} parent=50 // loop_exit
                  _
                loop: start=0, step=1, limit=1
                $region59: #{_vgae_forward_prepped.3} parent=50 // loop_pre_header
                  _
                $region60: #{_vgae_forward_prepped.3} parent=50 // loop_header
                  %s322 = sphi 0, %s326
                  %p323 = scmp.ge.s32.totalorder %s322, 1
                  %s327 = sphi %s262, %s262
                  %s328 = sphi %s257, %s257
                $region61: #{_vgae_forward_prepped.3} parent=50 // loop_header_branch
                  %325 = sbr.rel (%p323) target = $region65
                $region62: #{_vgae_forward_prepped.3} parent=50 // loop_body
                  %v329 = vld [vmem:[%s327] sm:$0xf]
                  %330 = vst [vmem:[%s328] sm:$0xf] %v329
                  %v331 = vld [vmem:[%s327 + $0xc] sm:$0xf]
                  %332 = vst [vmem:[%s328 + $0x4] sm:$0xf] %v331
                  %v333 = vld [vmem:[%s327 + $0x18] sm:$0xf]
                  %334 = vst [vmem:[%s328 + $0x8] sm:$0xf] %v333
                  %v335 = vld [vmem:[%s327 + $0x24] sm:$0xf]
                  %336 = vst [vmem:[%s328 + $0xc] sm:$0xf] %v335
                  %v337 = vld [vmem:[%s327 + $0x30] sm:$0xf]
                  %338 = vst [vmem:[%s328 + $0x10] sm:$0xf] %v337
                  %v339 = vld [vmem:[%s327 + $0x3c] sm:$0xf]
                  %340 = vst [vmem:[%s328 + $0x14] sm:$0xf] %v339
                  %v341 = vld [vmem:[%s327 + $0x48] sm:$0xf]
                  %342 = vst [vmem:[%s328 + $0x18] sm:$0xf] %v341
                  %v343 = vld [vmem:[%s327 + $0x54] sm:$0xf]
                  %344 = vst [vmem:[%s328 + $0x1c] sm:$0xf] %v343
                  %v345 = vld [vmem:[%s327 + $0x60] sm:$0xf]
                  %346 = vst [vmem:[%s328 + $0x20] sm:$0xf] %v345
                  %v347 = vld [vmem:[%s327 + $0x6c] sm:$0xf]
                  %348 = vst [vmem:[%s328 + $0x24] sm:$0xf] %v347
                  %v349 = vld [vmem:[%s327 + $0x78] sm:$0xf]
                  %350 = vst [vmem:[%s328 + $0x28] sm:$0xf] %v349
                  %v351 = vld [vmem:[%s327 + $0x84] sm:$0xf]
                  %352 = vst [vmem:[%s328 + $0x2c] sm:$0xf] %v351
                  %v353 = vld [vmem:[%s327 + $0x90] sm:$0xf]
                  %354 = vst [vmem:[%s328 + $0x30] sm:$0xf] %v353
                  %v355 = vld [vmem:[%s327 + $0x9c] sm:$0xf]
                  %356 = vst [vmem:[%s328 + $0x34] sm:$0xf] %v355
                  %v357 = vld [vmem:[%s327 + $0xa8] sm:$0xf]
                  %358 = vst [vmem:[%s328 + $0x38] sm:$0xf] %v357
                  %v359 = vld [vmem:[%s327 + $0xb4] sm:$0xf]
                  %360 = vst [vmem:[%s328 + $0x3c] sm:$0xf] %v359
                $region63: #{_vgae_forward_prepped.3} parent=50 // loop_footer
                  %s326 = sadd.s32 1, %s322
                $region64: #{_vgae_forward_prepped.3} parent=50 // loop_footer_branch
                  %321 = sbr.rel target = $region60
                $region65: #{_vgae_forward_prepped.3} parent=50 // loop_exit
                  _
              $region51: #{_vgae_forward_prepped.3} parent=35 // pred_fallthru
                _
            $region36: #{_vgae_forward_prepped.3} parent=31 // pred_fallthru
              _
            // Predicated region
            $region37: #{_vgae_forward_prepped.3} parent=31 // pred_check
              _
            $region38: #{_vgae_forward_prepped.3} parent=31 // pred_check_branch
              %268 = sbr.rel (0) target = $region40
            $region39: #{_vgae_forward_prepped.3} parent=31 // pred_region
              loop: start=0, step=1, limit=1
              $region41: #{_vgae_forward_prepped.3} parent=39 // loop_pre_header
                _
              $region42: #{_vgae_forward_prepped.3} parent=39 // loop_header
                %s271 = sphi 0, %s275
                %p272 = scmp.ge.s32.totalorder %s271, 1
                %s276 = sphi %s262, %s262
                %s277 = sphi %s257, %s257
              $region43: #{_vgae_forward_prepped.3} parent=39 // loop_header_branch
                %274 = sbr.rel (%p272) target = $region47
              $region44: #{_vgae_forward_prepped.3} parent=39 // loop_body
                %v278 = vld [vmem:[%s276] sm:$0xf]
                %279 = vst [vmem:[%s277] sm:$0xf] %v278
                %v280 = vld [vmem:[%s276 + $0xc] sm:$0xf]
                %281 = vst [vmem:[%s277 + $0x4] sm:$0xf] %v280
                %v282 = vld [vmem:[%s276 + $0x18] sm:$0xf]
                %283 = vst [vmem:[%s277 + $0x8] sm:$0xf] %v282
                %v284 = vld [vmem:[%s276 + $0x24] sm:$0xf]
                %285 = vst [vmem:[%s277 + $0xc] sm:$0xf] %v284
                %v286 = vld [vmem:[%s276 + $0x30] sm:$0xf]
                %287 = vst [vmem:[%s277 + $0x10] sm:$0xf] %v286
                %v288 = vld [vmem:[%s276 + $0x3c] sm:$0xf]
                %289 = vst [vmem:[%s277 + $0x14] sm:$0xf] %v288
                %v290 = vld [vmem:[%s276 + $0x48] sm:$0xf]
                %291 = vst [vmem:[%s277 + $0x18] sm:$0xf] %v290
                %v292 = vld [vmem:[%s276 + $0x54] sm:$0xf]
                %293 = vst [vmem:[%s277 + $0x1c] sm:$0xf] %v292
                %v294 = vld [vmem:[%s276 + $0x60] sm:$0xf]
                %295 = vst [vmem:[%s277 + $0x20] sm:$0xf] %v294
                %v296 = vld [vmem:[%s276 + $0x6c] sm:$0xf]
                %297 = vst [vmem:[%s277 + $0x24] sm:$0xf] %v296
                %v298 = vld [vmem:[%s276 + $0x78] sm:$0xf]
                %299 = vst [vmem:[%s277 + $0x28] sm:$0xf] %v298
                %v300 = vld [vmem:[%s276 + $0x84] sm:$0xf]
                %301 = vst [vmem:[%s277 + $0x2c] sm:$0xf] %v300
                %v302 = vld [vmem:[%s276 + $0x90] sm:$0xf]
                %303 = vst [vmem:[%s277 + $0x30] sm:$0xf] %v302
                %v304 = vld [vmem:[%s276 + $0x9c] sm:$0xf]
                %305 = vst [vmem:[%s277 + $0x34] sm:$0xf] %v304
                %v306 = vld [vmem:[%s276 + $0xa8] sm:$0xf]
                %307 = vst [vmem:[%s277 + $0x38] sm:$0xf] %v306
                %v308 = vld [vmem:[%s276 + $0xb4] sm:$0xf]
                %309 = vst [vmem:[%s277 + $0x3c] sm:$0xf] %v308
              $region45: #{_vgae_forward_prepped.3} parent=39 // loop_footer
                %s275 = sadd.s32 1, %s271
              $region46: #{_vgae_forward_prepped.3} parent=39 // loop_footer_branch
                %270 = sbr.rel target = $region42
              $region47: #{_vgae_forward_prepped.3} parent=39 // loop_exit
                _
            $region40: #{_vgae_forward_prepped.3} parent=31 // pred_fallthru
              _
          $region32: #{_vgae_forward_prepped.3} parent=27 // pred_fallthru
            _
          %361 = vnop
        $region28: #{_vgae_forward_prepped.3} parent=23 // pred_fallthru
          _
        // Predicated region
        $region66: #{_vgae_forward_prepped.3} parent=23 // pred_check
          %p362 = pneg %p74
        $region67: #{_vgae_forward_prepped.3} parent=23 // pred_check_branch
          %364 = sbr.rel (%p362) target = $region69
        $region68: #{_vgae_forward_prepped.3} parent=23 // pred_region
          %s365 = smul.u32 16, %s22
          %p366 = scmp.lt.s32.totalorder %s365, 47
          %s367 = scalar_select %p366, %s365, 47
          %s368 = smul.addr %s367, 4
          %s369 = scalar_lea.vmem %s1, %s368
          %s370 = smul.u32 16, %s22
        $region69: #{_vgae_forward_prepped.3} parent=23 // pred_fallthru
          _
        // Predicated region
        $region70: #{_vgae_forward_prepped.3} parent=23 // pred_check
          %p371 = pneg %p142
        $region71: #{_vgae_forward_prepped.3} parent=23 // pred_check_branch
          %373 = sbr.rel (%p371) target = $region73
        $region72: #{_vgae_forward_prepped.3} parent=23 // pred_region
          %s374 = smul.u32 16, %s21
          %p375 = scmp.lt.s32.totalorder %s374, 47
          %s376 = scalar_select %p375, %s374, 47
          %s377 = smul.addr %s376, 8
          %s378 = scalar_lea.vmem %s4, %s377
          %s379 = smul.u32 16, %s21
        $region73: #{_vgae_forward_prepped.3} parent=23 // pred_fallthru
          _
      $region24: #{_vgae_forward_prepped.3} parent=5 // pred_fallthru
        _
      %p380 = scmp.le.s32.totalorder 1, %s14
      %p381 = scmp.lt.s32.totalorder %s14, 10
      %p382 = pnand %p380, %p381
      %p383 = pneg %p382
      // Predicated region
      $region74: #{_vgae_forward_prepped.3} parent=5 // pred_check
        _
      $region75: #{_vgae_forward_prepped.3} parent=5 // pred_check_branch
        %385 = sbr.rel (%p382) target = $region77
      $region76: #{_vgae_forward_prepped.3} parent=5 // pred_region
        %s386 = ssub.s32 %s14, 1
        %s387 = sand.u32 %s41, 1
        %s388 = sand.u32 %s41, 1
        %s389 = smul.addr %s388, 64
        %s390 = scalar_lea.vmem [#allocation3], %s389
        // Predicated region
        $region78: #{_vgae_forward_prepped.3} parent=76 // pred_check
          %p391 = pneg %p54
        $region79: #{_vgae_forward_prepped.3} parent=76 // pred_check_branch
          %393 = sbr.rel (%p391) target = $region81
        $region80: #{_vgae_forward_prepped.3} parent=76 // pred_region
          _
        $region81: #{_vgae_forward_prepped.3} parent=76 // pred_fallthru
          _
        %s394 = sand.u32 %s41, 1
        %s395 = sand.u32 %s41, 1
        %s396 = smul.addr %s395, 64
        %s397 = scalar_lea.vmem [#allocation3], %s396
        %p398 = pneg %p54
        %p399 = pneg %p51
        %s400 = smul.u32 16, %s24
        %p401 = scmp.lt.s32.totalorder %s400, 47
        %s402 = scalar_select %p401, %s400, 47
        %s403 = smul.addr %s402, 4
        %s404 = scalar_lea.vmem %s1, %s403
        %p405 = pneg %p80
        %p406 = pneg %p77
        %p407 = pneg %p101
        %p408 = pneg %p98
        %p409 = pneg %p122
        %p410 = pneg %p119
        %s411 = smul.u32 16, %s23
        %p412 = scmp.lt.s32.totalorder %s411, 47
        %s413 = scalar_select %p412, %s411, 47
        %s414 = smul.addr %s413, 8
        %s415 = scalar_lea.vmem %s4, %s414
        %p416 = pneg %p148
        %p417 = pneg %p145
        %p418 = pneg %p174
        %p419 = pneg %p171
        %s420 = smul.u32 16, %s23
        %p421 = scmp.lt.s32.totalorder %s420, 47
        %s422 = scalar_select %p421, %s420, 47
        %s423 = smul.addr %s422, 8
        %s424 = scalar_lea.vmem %s5, %s423
        %p425 = pneg %p200
        %p426 = pneg %p197
        %s427 = smul.u32 16, %s23
        %p428 = scmp.lt.s32.totalorder %s427, 47
        %s429 = scalar_select %p428, %s427, 47
        %s430 = smul.addr %s429, 8
        %s431 = scalar_lea.vmem %s6, %s430
        %p432 = pneg %p226
        %p433 = pneg %p223
        %s434 = smul.u32 16, %s23
        %p435 = scmp.lt.s32.totalorder %s434, 47
        %s436 = scalar_select %p435, %s434, 47
        %s437 = smul.addr %s436, 8
        %s438 = scalar_lea.vmem %s7, %s437
        %s439 = smul.u32 16, %s23
        %s440 = smul.u32 16, %s24
        %p441 = scmp.lt.s32.totalorder %s440, 47
        %s442 = scalar_select %p441, %s440, 47
        %s443 = smul.addr %s442, 4
        %s444 = scalar_lea.vmem %s1, %s443
        %s445 = smul.u32 16, %s24
        %s446 = smul.u32 16, %s23
        %p447 = scmp.lt.s32.totalorder %s446, 47
        %s448 = scalar_select %p447, %s446, 47
        %s449 = smul.addr %s448, 8
        %s450 = scalar_lea.vmem %s4, %s449
        %s451 = smul.u32 16, %s23
        %s452 = smul.u32 16, %s23
        %p453 = scmp.lt.s32.totalorder %s452, 47
        %s454 = scalar_select %p453, %s452, 47
        %s455 = smul.addr %s454, 8
        %s456 = scalar_lea.vmem %s5, %s455
        %s457 = smul.u32 16, %s23
        %s458 = smul.u32 16, %s23
        %p459 = scmp.lt.s32.totalorder %s458, 47
        %s460 = scalar_select %p459, %s458, 47
        %s461 = smul.addr %s460, 8
        %s462 = scalar_lea.vmem %s6, %s461
        %s463 = smul.u32 16, %s23
        %s464 = smul.u32 16, %s23
        %p465 = scmp.lt.s32.totalorder %s464, 47
        %s466 = scalar_select %p465, %s464, 47
        %s467 = smul.addr %s466, 8
        %s468 = scalar_lea.vmem %s7, %s467
        %s469 = smul.u32 16, %s23
        %p471 = scmp.eq.s32.totalorder %s24, 0
        // Predicated region
        $region82: #{_vgae_forward_prepped.3} parent=76 // pred_check
          %p472 = pneg %p471
        $region83: #{_vgae_forward_prepped.3} parent=76 // pred_check_branch
          %474 = sbr.rel (%p472) target = $region85
        $region84: #{_vgae_forward_prepped.3} parent=76 // pred_region
          %475 = vst [vmem:[#allocation2] sm:$0xff] 0.0
          %476 = vst [vmem:[#allocation2 + $0x8] sm:$0xff] 0.0
          %477 = vst [vmem:[#allocation2 + $0x10] sm:$0xff] 0.0
          %478 = vst [vmem:[#allocation2 + $0x18] sm:$0xff] 0.0
          %479 = vst [vmem:[#allocation2 + $0x20] sm:$0xff] 0.0
          %480 = vst [vmem:[#allocation2 + $0x28] sm:$0xff] 0.0
          %481 = vst [vmem:[#allocation2 + $0x30] sm:$0xff] 0.0
          %482 = vst [vmem:[#allocation2 + $0x38] sm:$0xff] 0.0
          %483 = vst [vmem:[#allocation2 + $0x40] sm:$0xff] 0.0
          %484 = vst [vmem:[#allocation2 + $0x48] sm:$0xff] 0.0
          %485 = vst [vmem:[#allocation2 + $0x50] sm:$0xff] 0.0
          %486 = vst [vmem:[#allocation2 + $0x58] sm:$0xff] 0.0
          %487 = vst [vmem:[#allocation2 + $0x60] sm:$0xff] 0.0
          %488 = vst [vmem:[#allocation2 + $0x68] sm:$0xff] 0.0
          %489 = vst [vmem:[#allocation2 + $0x70] sm:$0xff] 0.0
          %490 = vst [vmem:[#allocation2 + $0x78] sm:$0xff] 0.0
          %491 = vst [vmem:[#allocation2 + $0x80] sm:$0xff] 0.0
          %492 = vst [vmem:[#allocation2 + $0x88] sm:$0xff] 0.0
          %493 = vst [vmem:[#allocation2 + $0x90] sm:$0xff] 0.0
          %494 = vst [vmem:[#allocation2 + $0x98] sm:$0xff] 0.0
          %495 = vst [vmem:[#allocation2 + $0xa0] sm:$0xff] 0.0
          %496 = vst [vmem:[#allocation2 + $0xa8] sm:$0xff] 0.0
          %497 = vst [vmem:[#allocation2 + $0xb0] sm:$0xff] 0.0
          %498 = vst [vmem:[#allocation2 + $0xb8] sm:$0xff] 0.0
          %499 = vst [vmem:[#allocation2 + $0xc0] sm:$0xff] 0.0
          %500 = vst [vmem:[#allocation2 + $0xc8] sm:$0xff] 0.0
          %501 = vst [vmem:[#allocation2 + $0xd0] sm:$0xff] 0.0
          %502 = vst [vmem:[#allocation2 + $0xd8] sm:$0xff] 0.0
          %503 = vst [vmem:[#allocation2 + $0xe0] sm:$0xff] 0.0
          %504 = vst [vmem:[#allocation2 + $0xe8] sm:$0xff] 0.0
          %505 = vst [vmem:[#allocation2 + $0xf0] sm:$0xff] 0.0
          %506 = vst [vmem:[#allocation2 + $0xf8] sm:$0xff] 0.0
        $region85: #{_vgae_forward_prepped.3} parent=76 // pred_fallthru
          _
        %v507 = vld [vmem:[%s444] sm:$0xf]
        %v508 = vld [vmem:[%s444 + $0x4] sm:$0xf]
        %v509 = vld [vmem:[%s444 + $0x8] sm:$0xf]
        %v510 = vld [vmem:[%s444 + $0xc] sm:$0xf]
        %v511 = vld [vmem:[%s444 + $0x10] sm:$0xf]
        %v512 = vld [vmem:[%s444 + $0x14] sm:$0xf]
        %v513 = vld [vmem:[%s444 + $0x18] sm:$0xf]
        %v514 = vld [vmem:[%s444 + $0x1c] sm:$0xf]
        %v515 = vld [vmem:[%s444 + $0x20] sm:$0xf]
        %v516 = vld [vmem:[%s444 + $0x24] sm:$0xf]
        %v517 = vld [vmem:[%s444 + $0x28] sm:$0xf]
        %v518 = vld [vmem:[%s444 + $0x2c] sm:$0xf]
        %v519 = vld [vmem:[%s444 + $0x30] sm:$0xf]
        %v520 = vld [vmem:[%s444 + $0x34] sm:$0xf]
        %v521 = vld [vmem:[%s444 + $0x38] sm:$0xf]
        %v522 = vld [vmem:[%s444 + $0x3c] sm:$0xf]
        %v523 = vld [vmem:[%s2] sm:$0xff]
        %v524 = vld [vmem:[%s2 + $0x8] sm:$0xff]
        %v525 = vld [vmem:[%s2 + $0x10] sm:$0xff]
        %v526 = vld [vmem:[%s2 + $0x18] sm:$0xff]
        %v527 = vld [vmem:[%s2 + $0x20] sm:$0xff]
        %v528 = vld [vmem:[%s2 + $0x28] sm:$0xff]
        %v529 = vld [vmem:[%s2 + $0x30] sm:$0xff]
        %v530 = vld [vmem:[%s2 + $0x38] sm:$0xff]
        %v531 = vld [vmem:[%s2 + $0x40] sm:$0xff]
        %v532 = vld [vmem:[%s2 + $0x48] sm:$0xff]
        %v533 = vld [vmem:[%s2 + $0x50] sm:$0xff]
        %v534 = vld [vmem:[%s2 + $0x58] sm:$0xff]
        %v535 = vld [vmem:[%s2 + $0x60] sm:$0xff]
        %v536 = vld [vmem:[%s2 + $0x68] sm:$0xff]
        %v537 = vld [vmem:[%s2 + $0x70] sm:$0xff]
        %v538 = vld [vmem:[%s2 + $0x78] sm:$0xff]
        %v555 = vunpack.c.l.b16 %v507
        %v556 = vunpack.c.l.b16 %v508
        %v557 = vunpack.c.l.b16 %v509
        %v558 = vunpack.c.l.b16 %v510
        %v559 = vunpack.c.l.b16 %v511
        %v560 = vunpack.c.l.b16 %v512
        %v561 = vunpack.c.l.b16 %v513
        %v562 = vunpack.c.l.b16 %v514
        %v563 = vunpack.c.l.b16 %v515
        %v564 = vunpack.c.l.b16 %v516
        %v565 = vunpack.c.l.b16 %v517
        %v566 = vunpack.c.l.b16 %v518
        %v567 = vunpack.c.l.b16 %v519
        %v568 = vunpack.c.l.b16 %v520
        %v569 = vunpack.c.l.b16 %v521
        %v570 = vunpack.c.l.b16 %v522
        %v571 = vpack.c.b16 %v556, %v555
        %v572 = vpack.c.b16 %v558, %v557
        %v573 = vpack.c.b16 %v560, %v559
        %v574 = vpack.c.b16 %v562, %v561
        %v575 = vpack.c.b16 %v564, %v563
        %v576 = vpack.c.b16 %v566, %v565
        %v577 = vpack.c.b16 %v568, %v567
        %v578 = vpack.c.b16 %v570, %v569
        %v603 = vunpack.c.l.b16 %v523
        %v604 = vunpack.c.h.b16 %v523
        %v605 = vunpack.c.l.b16 %v524
        %v606 = vunpack.c.h.b16 %v524
        %v607 = vunpack.c.l.b16 %v525
        %v608 = vunpack.c.h.b16 %v525
        %v609 = vunpack.c.l.b16 %v526
        %v610 = vunpack.c.h.b16 %v526
        %v611 = vunpack.c.l.b16 %v527
        %v612 = vunpack.c.h.b16 %v527
        %v613 = vunpack.c.l.b16 %v528
        %v614 = vunpack.c.h.b16 %v528
        %v615 = vunpack.c.l.b16 %v529
        %v616 = vunpack.c.h.b16 %v529
        %v617 = vunpack.c.l.b16 %v530
        %v618 = vunpack.c.h.b16 %v530
        %v619 = vunpack.c.l.b16 %v531
        %v620 = vunpack.c.h.b16 %v531
        %v621 = vunpack.c.l.b16 %v532
        %v622 = vunpack.c.h.b16 %v532
        %v623 = vunpack.c.l.b16 %v533
        %v624 = vunpack.c.h.b16 %v533
        %v625 = vunpack.c.l.b16 %v534
        %v626 = vunpack.c.h.b16 %v534
        %v627 = vunpack.c.l.b16 %v535
        %v628 = vunpack.c.h.b16 %v535
        %v629 = vunpack.c.l.b16 %v536
        %v630 = vunpack.c.h.b16 %v536
        %v631 = vunpack.c.l.b16 %v537
        %v632 = vunpack.c.h.b16 %v537
        %v633 = vunpack.c.l.b16 %v538
        %v634 = vunpack.c.h.b16 %v538
        %v635 = vpack.c.b16 %v605, %v603
        %v636 = vpack.c.b16 %v606, %v604
        %v637 = vpack.c.b16 %v609, %v607
        %v638 = vpack.c.b16 %v610, %v608
        %v639 = vpack.c.b16 %v613, %v611
        %v640 = vpack.c.b16 %v614, %v612
        %v641 = vpack.c.b16 %v617, %v615
        %v642 = vpack.c.b16 %v618, %v616
        %v643 = vpack.c.b16 %v621, %v619
        %v644 = vpack.c.b16 %v622, %v620
        %v645 = vpack.c.b16 %v625, %v623
        %v646 = vpack.c.b16 %v626, %v624
        %v647 = vpack.c.b16 %v629, %v627
        %v648 = vpack.c.b16 %v630, %v628
        %v649 = vpack.c.b16 %v633, %v631
        %v650 = vpack.c.b16 %v634, %v632
        %667 = vmatprep.subr.bf16.mxu0 %v636
        %668 = vmatpush1.bf16.msra.mxu0 %v635
        %669 = vmatprep.subr.bf16.mxu0 %v638
        %670 = vmatpush1.bf16.msra.mxu0 %v637
        %671 = vmatprep.subr.bf16.mxu0 %v640
        %672 = vmatpush1.bf16.msra.mxu0 %v639
        %673 = vmatprep.subr.bf16.mxu0 %v642
        %674 = vmatpush1.bf16.msra.mxu0 %v641
        %675 = vmatprep.subr.bf16.mxu0 %v644
        %676 = vmatpush1.bf16.msra.mxu0 %v643
        %677 = vmatprep.subr.bf16.mxu0 %v646
        %678 = vmatpush1.bf16.msra.mxu0 %v645
        %679 = vmatprep.subr.bf16.mxu0 %v648
        %680 = vmatpush1.bf16.msra.mxu0 %v647
        %681 = vmatprep.subr.bf16.mxu0 %v650
        %682 = vmatpush1.bf16.msra.mxu0 %v649
        %683 = vmatprep.subr.bf16.mxu0 0
        %684 = vmatpush1.bf16.msra.mxu0 0
        %685 = vmatprep.subr.bf16.mxu0 0
        %686 = vmatpush1.bf16.msra.mxu0 0
        %687 = vmatprep.subr.bf16.mxu0 0
        %688 = vmatpush1.bf16.msra.mxu0 0
        %689 = vmatprep.subr.bf16.mxu0 0
        %690 = vmatpush1.bf16.msra.mxu0 0
        %691 = vmatprep.subr.bf16.mxu0 0
        %692 = vmatpush1.bf16.msra.mxu0 0
        %693 = vmatprep.subr.bf16.mxu0 0
        %694 = vmatpush1.bf16.msra.mxu0 0
        %695 = vmatprep.subr.bf16.mxu0 0
        %696 = vmatpush1.bf16.msra.mxu0 0
        %697 = vmatprep.subr.bf16.mxu0 0
        %698 = vmatpush1.bf16.msra.mxu0 0
        %699 = vmatprep.mubr.bf16.mxu0 0
        %700 = vmatmul.mubr.bf16.gmra.mrb[0].mxu0 %v571
        %v701 = vpop.f32.mrb[0].mxu0
        %v702 = vadd.f32 0.0, %v701
        %v703 = vpop.f32.mrb[0].mxu0
        %v704 = vadd.f32 0.0, %v703
        %v705 = vpop.f32.mrb[0].mxu0
        %v706 = vadd.f32 0.0, %v705
        %v707 = vpop.f32.mrb[0].mxu0
        %v708 = vadd.f32 0.0, %v707
        %709 = vmatprep.mubr.bf16.mxu0 0
        %710 = vmatmul.mubr.bf16.gmra.mrb[0].mxu0 %v572
        %v711 = vpop.f32.mrb[0].mxu0
        %v712 = vadd.f32 0.0, %v711
        %v713 = vpop.f32.mrb[0].mxu0
        %v714 = vadd.f32 0.0, %v713
        %v715 = vpop.f32.mrb[0].mxu0
        %v716 = vadd.f32 0.0, %v715
        %v717 = vpop.f32.mrb[0].mxu0
        %v718 = vadd.f32 0.0, %v717
        %719 = vmatprep.mubr.bf16.mxu0 0
        %720 = vmatmul.mubr.bf16.gmra.mrb[0].mxu0 %v573
        %v721 = vpop.f32.mrb[0].mxu0
        %v722 = vadd.f32 0.0, %v721
        %v723 = vpop.f32.mrb[0].mxu0
        %v724 = vadd.f32 0.0, %v723
        %v725 = vpop.f32.mrb[0].mxu0
        %v726 = vadd.f32 0.0, %v725
        %v727 = vpop.f32.mrb[0].mxu0
        %v728 = vadd.f32 0.0, %v727
        %729 = vmatprep.mubr.bf16.mxu0 0
        %730 = vmatmul.mubr.bf16.gmra.mrb[0].mxu0 %v574
        %v731 = vpop.f32.mrb[0].mxu0
        %v732 = vadd.f32 0.0, %v731
        %v733 = vpop.f32.mrb[0].mxu0
        %v734 = vadd.f32 0.0, %v733
        %v735 = vpop.f32.mrb[0].mxu0
        %v736 = vadd.f32 0.0, %v735
        %v737 = vpop.f32.mrb[0].mxu0
        %v738 = vadd.f32 0.0, %v737
        %739 = vmatprep.mubr.bf16.mxu0 0
        %740 = vmatmul.mubr.bf16.gmra.mrb[0].mxu0 %v575
        %v741 = vpop.f32.mrb[0].mxu0
        %v742 = vadd.f32 0.0, %v741
        %v743 = vpop.f32.mrb[0].mxu0
        %v744 = vadd.f32 0.0, %v743
        %v745 = vpop.f32.mrb[0].mxu0
        %v746 = vadd.f32 0.0, %v745
        %v747 = vpop.f32.mrb[0].mxu0
        %v748 = vadd.f32 0.0, %v747
        %749 = vmatprep.mubr.bf16.mxu0 0
        %750 = vmatmul.mubr.bf16.gmra.mrb[0].mxu0 %v576
        %v751 = vpop.f32.mrb[0].mxu0
        %v752 = vadd.f32 0.0, %v751
        %v753 = vpop.f32.mrb[0].mxu0
        %v754 = vadd.f32 0.0, %v753
        %v755 = vpop.f32.mrb[0].mxu0
        %v756 = vadd.f32 0.0, %v755
        %v757 = vpop.f32.mrb[0].mxu0
        %v758 = vadd.f32 0.0, %v757
        %759 = vmatprep.mubr.bf16.mxu0 0
        %760 = vmatmul.mubr.bf16.gmra.mrb[0].mxu0 %v577
        %v761 = vpop.f32.mrb[0].mxu0
        %v762 = vadd.f32 0.0, %v761
        %v763 = vpop.f32.mrb[0].mxu0
        %v764 = vadd.f32 0.0, %v763
        %v765 = vpop.f32.mrb[0].mxu0
        %v766 = vadd.f32 0.0, %v765
        %v767 = vpop.f32.mrb[0].mxu0
        %v768 = vadd.f32 0.0, %v767
        %769 = vmatprep.mubr.bf16.mxu0 0
        %770 = vmatmul.mubr.bf16.gmra.mrb[0].mxu0 %v578
        %v771 = vpop.f32.mrb[0].mxu0
        %v772 = vadd.f32 0.0, %v771
        %v773 = vpop.f32.mrb[0].mxu0
        %v774 = vadd.f32 0.0, %v773
        %v775 = vpop.f32.mrb[0].mxu0
        %v776 = vadd.f32 0.0, %v775
        %v777 = vpop.f32.mrb[0].mxu0
        %v778 = vadd.f32 0.0, %v777
        %779 = vdwg.mxu0
        %v780 = vpack.c.bf16 %v706, %v702
        %v781 = vpack.c.bf16 %v708, %v704
        %v782 = vpack.c.bf16 %v716, %v712
        %v783 = vpack.c.bf16 %v718, %v714
        %v784 = vpack.c.bf16 %v726, %v722
        %v785 = vpack.c.bf16 %v728, %v724
        %v786 = vpack.c.bf16 %v736, %v732
        %v787 = vpack.c.bf16 %v738, %v734
        %v788 = vpack.c.bf16 %v746, %v742
        %v789 = vpack.c.bf16 %v748, %v744
        %v790 = vpack.c.bf16 %v756, %v752
        %v791 = vpack.c.bf16 %v758, %v754
        %v792 = vpack.c.bf16 %v766, %v762
        %v793 = vpack.c.bf16 %v768, %v764
        %v794 = vpack.c.bf16 %v776, %v772
        %v795 = vpack.c.bf16 %v778, %v774
        %v796 = vld [vmem:[#allocation2] sm:$0xff]
        %v797 = vld [vmem:[#allocation2 + $0x8] sm:$0xff]
        %v798 = vld [vmem:[#allocation2 + $0x10] sm:$0xff]
        %v799 = vld [vmem:[#allocation2 + $0x18] sm:$0xff]
        %v800 = vld [vmem:[#allocation2 + $0x20] sm:$0xff]
        %v801 = vld [vmem:[#allocation2 + $0x28] sm:$0xff]
        %v802 = vld [vmem:[#allocation2 + $0x30] sm:$0xff]
        %v803 = vld [vmem:[#allocation2 + $0x38] sm:$0xff]
        %v804 = vld [vmem:[#allocation2 + $0x40] sm:$0xff]
        %v805 = vld [vmem:[#allocation2 + $0x48] sm:$0xff]
        %v806 = vld [vmem:[#allocation2 + $0x50] sm:$0xff]
        %v807 = vld [vmem:[#allocation2 + $0x58] sm:$0xff]
        %v808 = vld [vmem:[#allocation2 + $0x60] sm:$0xff]
        %v809 = vld [vmem:[#allocation2 + $0x68] sm:$0xff]
        %v810 = vld [vmem:[#allocation2 + $0x70] sm:$0xff]
        %v811 = vld [vmem:[#allocation2 + $0x78] sm:$0xff]
        %v812 = vld [vmem:[#allocation2 + $0x80] sm:$0xff]
        %v813 = vld [vmem:[#allocation2 + $0x88] sm:$0xff]
        %v814 = vld [vmem:[#allocation2 + $0x90] sm:$0xff]
        %v815 = vld [vmem:[#allocation2 + $0x98] sm:$0xff]
        %v816 = vld [vmem:[#allocation2 + $0xa0] sm:$0xff]
        %v817 = vld [vmem:[#allocation2 + $0xa8] sm:$0xff]
        %v818 = vld [vmem:[#allocation2 + $0xb0] sm:$0xff]
        %v819 = vld [vmem:[#allocation2 + $0xb8] sm:$0xff]
        %v820 = vld [vmem:[#allocation2 + $0xc0] sm:$0xff]
        %v821 = vld [vmem:[#allocation2 + $0xc8] sm:$0xff]
        %v822 = vld [vmem:[#allocation2 + $0xd0] sm:$0xff]
        %v823 = vld [vmem:[#allocation2 + $0xd8] sm:$0xff]
        %v824 = vld [vmem:[#allocation2 + $0xe0] sm:$0xff]
        %v825 = vld [vmem:[#allocation2 + $0xe8] sm:$0xff]
        %v826 = vld [vmem:[#allocation2 + $0xf0] sm:$0xff]
        %v827 = vld [vmem:[#allocation2 + $0xf8] sm:$0xff]
        %v828 = vld [vmem:[%s390] sm:$0xf]
        %v829 = vld [vmem:[%s390 + $0x4] sm:$0xf]
        %v830 = vld [vmem:[%s390 + $0x8] sm:$0xf]
        %v831 = vld [vmem:[%s390 + $0xc] sm:$0xf]
        %v832 = vld [vmem:[%s390 + $0x10] sm:$0xf]
        %v833 = vld [vmem:[%s390 + $0x14] sm:$0xf]
        %v834 = vld [vmem:[%s390 + $0x18] sm:$0xf]
        %v835 = vld [vmem:[%s390 + $0x1c] sm:$0xf]
        %v836 = vld [vmem:[%s390 + $0x20] sm:$0xf]
        %v837 = vld [vmem:[%s390 + $0x24] sm:$0xf]
        %v838 = vld [vmem:[%s390 + $0x28] sm:$0xf]
        %v839 = vld [vmem:[%s390 + $0x2c] sm:$0xf]
        %v840 = vld [vmem:[%s390 + $0x30] sm:$0xf]
        %v841 = vld [vmem:[%s390 + $0x34] sm:$0xf]
        %v842 = vld [vmem:[%s390 + $0x38] sm:$0xf]
        %v843 = vld [vmem:[%s390 + $0x3c] sm:$0xf]
        %v860 = vunpack.c.l.b16 %v828
        %v861 = vunpack.c.l.b16 %v829
        %v862 = vunpack.c.l.b16 %v830
        %v863 = vunpack.c.l.b16 %v831
        %v864 = vunpack.c.l.b16 %v832
        %v865 = vunpack.c.l.b16 %v833
        %v866 = vunpack.c.l.b16 %v834
        %v867 = vunpack.c.l.b16 %v835
        %v868 = vunpack.c.l.b16 %v836
        %v869 = vunpack.c.l.b16 %v837
        %v870 = vunpack.c.l.b16 %v838
        %v871 = vunpack.c.l.b16 %v839
        %v872 = vunpack.c.l.b16 %v840
        %v873 = vunpack.c.l.b16 %v841
        %v874 = vunpack.c.l.b16 %v842
        %v875 = vunpack.c.l.b16 %v843
        %v876 = vpack.c.b16 %v861, %v860
        %v877 = vpack.c.b16 %v863, %v862
        %v878 = vpack.c.b16 %v865, %v864
        %v879 = vpack.c.b16 %v867, %v866
        %v880 = vpack.c.b16 %v869, %v868
        %v881 = vpack.c.b16 %v871, %v870
        %v882 = vpack.c.b16 %v873, %v872
        %v883 = vpack.c.b16 %v875, %v874
        %892 = vmatprep.subr.bf16.mxu0 %v781
        %893 = vmatpush1.bf16.msra.mxu0 %v780
        %894 = vmatprep.subr.bf16.mxu0 %v783
        %895 = vmatpush1.bf16.msra.mxu0 %v782
        %896 = vmatprep.subr.bf16.mxu0 %v785
        %897 = vmatpush1.bf16.msra.mxu0 %v784
        %898 = vmatprep.subr.bf16.mxu0 %v787
        %899 = vmatpush1.bf16.msra.mxu0 %v786
        %900 = vmatprep.subr.bf16.mxu0 %v789
        %901 = vmatpush1.bf16.msra.mxu0 %v788
        %902 = vmatprep.subr.bf16.mxu0 %v791
        %903 = vmatpush1.bf16.msra.mxu0 %v790
        %904 = vmatprep.subr.bf16.mxu0 %v793
        %905 = vmatpush1.bf16.msra.mxu0 %v792
        %906 = vmatprep.subr.bf16.mxu0 %v795
        %907 = vmatpush1.bf16.msra.mxu0 %v794
        %908 = vmatprep.subr.bf16.mxu0 0
        %909 = vmatpush1.bf16.msra.mxu0 0
        %910 = vmatprep.subr.bf16.mxu0 0
        %911 = vmatpush1.bf16.msra.mxu0 0
        %912 = vmatprep.subr.bf16.mxu0 0
        %913 = vmatpush1.bf16.msra.mxu0 0
        %914 = vmatprep.subr.bf16.mxu0 0
        %915 = vmatpush1.bf16.msra.mxu0 0
        %916 = vmatprep.subr.bf16.mxu0 0
        %917 = vmatpush1.bf16.msra.mxu0 0
        %918 = vmatprep.subr.bf16.mxu0 0
        %919 = vmatpush1.bf16.msra.mxu0 0
        %920 = vmatprep.subr.bf16.mxu0 0
        %921 = vmatpush1.bf16.msra.mxu0 0
        %922 = vmatprep.subr.bf16.mxu0 0
        %923 = vmatpush1.bf16.msra.mxu0 0
        %924 = vmatprep.mubr.bf16.mxu0 0
        %925 = vmatmul.mubr.bf16.gmra.mrb[0].mxu0 %v876
        %v926 = vpop.f32.mrb[0].mxu0
        %v927 = vadd.f32 0.0, %v926
        %v928 = vpop.f32.mrb[0].mxu0
        %v929 = vadd.f32 0.0, %v928
        %v930 = vpop.f32.mrb[0].mxu0
        %v931 = vadd.f32 0.0, %v930
        %v932 = vpop.f32.mrb[0].mxu0
        %v933 = vadd.f32 0.0, %v932
        %934 = vmatprep.mubr.bf16.mxu0 0
        %935 = vmatmul.mubr.bf16.gmra.mrb[0].mxu0 %v877
        %v936 = vpop.f32.mrb[0].mxu0
        %v937 = vadd.f32 0.0, %v936
        %v938 = vpop.f32.mrb[0].mxu0
        %v939 = vadd.f32 0.0, %v938
        %v940 = vpop.f32.mrb[0].mxu0
        %v941 = vadd.f32 0.0, %v940
        %v942 = vpop.f32.mrb[0].mxu0
        %v943 = vadd.f32 0.0, %v942
        %944 = vmatprep.mubr.bf16.mxu0 0
        %945 = vmatmul.mubr.bf16.gmra.mrb[0].mxu0 %v878
        %v946 = vpop.f32.mrb[0].mxu0
        %v947 = vadd.f32 0.0, %v946
        %v948 = vpop.f32.mrb[0].mxu0
        %v949 = vadd.f32 0.0, %v948
        %v950 = vpop.f32.mrb[0].mxu0
        %v951 = vadd.f32 0.0, %v950
        %v952 = vpop.f32.mrb[0].mxu0
        %v953 = vadd.f32 0.0, %v952
        %954 = vmatprep.mubr.bf16.mxu0 0
        %955 = vmatmul.mubr.bf16.gmra.mrb[0].mxu0 %v879
        %v956 = vpop.f32.mrb[0].mxu0
        %v957 = vadd.f32 0.0, %v956
        %v958 = vpop.f32.mrb[0].mxu0
        %v959 = vadd.f32 0.0, %v958
        %v960 = vpop.f32.mrb[0].mxu0
        %v961 = vadd.f32 0.0, %v960
        %v962 = vpop.f32.mrb[0].mxu0
        %v963 = vadd.f32 0.0, %v962
        %964 = vmatprep.mubr.bf16.mxu0 0
        %965 = vmatmul.mubr.bf16.gmra.mrb[0].mxu0 %v880
        %v966 = vpop.f32.mrb[0].mxu0
        %v967 = vadd.f32 0.0, %v966
        %v968 = vpop.f32.mrb[0].mxu0
        %v969 = vadd.f32 0.0, %v968
        %v970 = vpop.f32.mrb[0].mxu0
        %v971 = vadd.f32 0.0, %v970
        %v972 = vpop.f32.mrb[0].mxu0
        %v973 = vadd.f32 0.0, %v972
        %974 = vmatprep.mubr.bf16.mxu0 0
        %975 = vmatmul.mubr.bf16.gmra.mrb[0].mxu0 %v881
        %v976 = vpop.f32.mrb[0].mxu0
        %v977 = vadd.f32 0.0, %v976
        %v978 = vpop.f32.mrb[0].mxu0
        %v979 = vadd.f32 0.0, %v978
        %v980 = vpop.f32.mrb[0].mxu0
        %v981 = vadd.f32 0.0, %v980
        %v982 = vpop.f32.mrb[0].mxu0
        %v983 = vadd.f32 0.0, %v982
        %984 = vmatprep.mubr.bf16.mxu0 0
        %985 = vmatmul.mubr.bf16.gmra.mrb[0].mxu0 %v882
        %v986 = vpop.f32.mrb[0].mxu0
        %v987 = vadd.f32 0.0, %v986
        %v988 = vpop.f32.mrb[0].mxu0
        %v989 = vadd.f32 0.0, %v988
        %v990 = vpop.f32.mrb[0].mxu0
        %v991 = vadd.f32 0.0, %v990
        %v992 = vpop.f32.mrb[0].mxu0
        %v993 = vadd.f32 0.0, %v992
        %994 = vmatprep.mubr.bf16.mxu0 0
        %995 = vmatmul.mubr.bf16.gmra.mrb[0].mxu0 %v883
        %v996 = vpop.f32.mrb[0].mxu0
        %v997 = vadd.f32 0.0, %v996
        %v998 = vpop.f32.mrb[0].mxu0
        %v999 = vadd.f32 0.0, %v998
        %v1000 = vpop.f32.mrb[0].mxu0
        %v1001 = vadd.f32 0.0, %v1000
        %v1002 = vpop.f32.mrb[0].mxu0
        %v1003 = vadd.f32 0.0, %v1002
        %1004 = vdwg.mxu0
        %v1005 = vadd.f32 %v796, %v927
        %v1006 = vadd.f32 %v797, %v929
        %v1007 = vadd.f32 %v798, %v931
        %v1008 = vadd.f32 %v799, %v933
        %v1009 = vadd.f32 %v800, %v937
        %v1010 = vadd.f32 %v801, %v939
        %v1011 = vadd.f32 %v802, %v941
        %v1012 = vadd.f32 %v803, %v943
        %v1013 = vadd.f32 %v804, %v947
        %v1014 = vadd.f32 %v805, %v949
        %v1015 = vadd.f32 %v806, %v951
        %v1016 = vadd.f32 %v807, %v953
        %v1017 = vadd.f32 %v808, %v957
        %v1018 = vadd.f32 %v809, %v959
        %v1019 = vadd.f32 %v810, %v961
        %v1020 = vadd.f32 %v811, %v963
        %v1021 = vadd.f32 %v812, %v967
        %v1022 = vadd.f32 %v813, %v969
        %v1023 = vadd.f32 %v814, %v971
        %v1024 = vadd.f32 %v815, %v973
        %v1025 = vadd.f32 %v816, %v977
        %v1026 = vadd.f32 %v817, %v979
        %v1027 = vadd.f32 %v818, %v981
        %v1028 = vadd.f32 %v819, %v983
        %v1029 = vadd.f32 %v820, %v987
        %v1030 = vadd.f32 %v821, %v989
        %v1031 = vadd.f32 %v822, %v991
        %v1032 = vadd.f32 %v823, %v993
        %v1033 = vadd.f32 %v824, %v997
        %v1034 = vadd.f32 %v825, %v999
        %v1035 = vadd.f32 %v826, %v1001
        %v1036 = vadd.f32 %v827, %v1003
        %1037 = vst [vmem:[#allocation2] sm:$0xff] %v1005
        %1038 = vst [vmem:[#allocation2 + $0x8] sm:$0xff] %v1006
        %1039 = vst [vmem:[#allocation2 + $0x10] sm:$0xff] %v1007
        %1040 = vst [vmem:[#allocation2 + $0x18] sm:$0xff] %v1008
        %1041 = vst [vmem:[#allocation2 + $0x20] sm:$0xff] %v1009
        %1042 = vst [vmem:[#allocation2 + $0x28] sm:$0xff] %v1010
        %1043 = vst [vmem:[#allocation2 + $0x30] sm:$0xff] %v1011
        %1044 = vst [vmem:[#allocation2 + $0x38] sm:$0xff] %v1012
        %1045 = vst [vmem:[#allocation2 + $0x40] sm:$0xff] %v1013
        %1046 = vst [vmem:[#allocation2 + $0x48] sm:$0xff] %v1014
        %1047 = vst [vmem:[#allocation2 + $0x50] sm:$0xff] %v1015
        %1048 = vst [vmem:[#allocation2 + $0x58] sm:$0xff] %v1016
        %1049 = vst [vmem:[#allocation2 + $0x60] sm:$0xff] %v1017
        %1050 = vst [vmem:[#allocation2 + $0x68] sm:$0xff] %v1018
        %1051 = vst [vmem:[#allocation2 + $0x70] sm:$0xff] %v1019
        %1052 = vst [vmem:[#allocation2 + $0x78] sm:$0xff] %v1020
        %1053 = vst [vmem:[#allocation2 + $0x80] sm:$0xff] %v1021
        %1054 = vst [vmem:[#allocation2 + $0x88] sm:$0xff] %v1022
        %1055 = vst [vmem:[#allocation2 + $0x90] sm:$0xff] %v1023
        %1056 = vst [vmem:[#allocation2 + $0x98] sm:$0xff] %v1024
        %1057 = vst [vmem:[#allocation2 + $0xa0] sm:$0xff] %v1025
        %1058 = vst [vmem:[#allocation2 + $0xa8] sm:$0xff] %v1026
        %1059 = vst [vmem:[#allocation2 + $0xb0] sm:$0xff] %v1027
        %1060 = vst [vmem:[#allocation2 + $0xb8] sm:$0xff] %v1028
        %1061 = vst [vmem:[#allocation2 + $0xc0] sm:$0xff] %v1029
        %1062 = vst [vmem:[#allocation2 + $0xc8] sm:$0xff] %v1030
        %1063 = vst [vmem:[#allocation2 + $0xd0] sm:$0xff] %v1031
        %1064 = vst [vmem:[#allocation2 + $0xd8] sm:$0xff] %v1032
        %1065 = vst [vmem:[#allocation2 + $0xe0] sm:$0xff] %v1033
        %1066 = vst [vmem:[#allocation2 + $0xe8] sm:$0xff] %v1034
        %1067 = vst [vmem:[#allocation2 + $0xf0] sm:$0xff] %v1035
        %1068 = vst [vmem:[#allocation2 + $0xf8] sm:$0xff] %v1036
        %p1069 = scmp.eq.s32.totalorder %s24, 2
        // Predicated region
        $region86: #{_vgae_forward_prepped.3} parent=76 // pred_check
          %p1070 = pneg %p1069
        $region87: #{_vgae_forward_prepped.3} parent=76 // pred_check_branch
          %1072 = sbr.rel (%p1070) target = $region89
        $region88: #{_vgae_forward_prepped.3} parent=76 // pred_region
          %v1073 = vld [vmem:[#allocation2] sm:$0xff]
          %v1074 = vld [vmem:[#allocation2 + $0x8] sm:$0xff]
          %v1075 = vld [vmem:[#allocation2 + $0x10] sm:$0xff]
          %v1076 = vld [vmem:[#allocation2 + $0x18] sm:$0xff]
          %v1077 = vld [vmem:[#allocation2 + $0x20] sm:$0xff]
          %v1078 = vld [vmem:[#allocation2 + $0x28] sm:$0xff]
          %v1079 = vld [vmem:[#allocation2 + $0x30] sm:$0xff]
          %v1080 = vld [vmem:[#allocation2 + $0x38] sm:$0xff]
          %v1081 = vld [vmem:[#allocation2 + $0x40] sm:$0xff]
          %v1082 = vld [vmem:[#allocation2 + $0x48] sm:$0xff]
          %v1083 = vld [vmem:[#allocation2 + $0x50] sm:$0xff]
          %v1084 = vld [vmem:[#allocation2 + $0x58] sm:$0xff]
          %v1085 = vld [vmem:[#allocation2 + $0x60] sm:$0xff]
          %v1086 = vld [vmem:[#allocation2 + $0x68] sm:$0xff]
          %v1087 = vld [vmem:[#allocation2 + $0x70] sm:$0xff]
          %v1088 = vld [vmem:[#allocation2 + $0x78] sm:$0xff]
          %v1089 = vld [vmem:[#allocation2 + $0x80] sm:$0xff]
          %v1090 = vld [vmem:[#allocation2 + $0x88] sm:$0xff]
          %v1091 = vld [vmem:[#allocation2 + $0x90] sm:$0xff]
          %v1092 = vld [vmem:[#allocation2 + $0x98] sm:$0xff]
          %v1093 = vld [vmem:[#allocation2 + $0xa0] sm:$0xff]
          %v1094 = vld [vmem:[#allocation2 + $0xa8] sm:$0xff]
          %v1095 = vld [vmem:[#allocation2 + $0xb0] sm:$0xff]
          %v1096 = vld [vmem:[#allocation2 + $0xb8] sm:$0xff]
          %v1097 = vld [vmem:[#allocation2 + $0xc0] sm:$0xff]
          %v1098 = vld [vmem:[#allocation2 + $0xc8] sm:$0xff]
          %v1099 = vld [vmem:[#allocation2 + $0xd0] sm:$0xff]
          %v1100 = vld [vmem:[#allocation2 + $0xd8] sm:$0xff]
          %v1101 = vld [vmem:[#allocation2 + $0xe0] sm:$0xff]
          %v1102 = vld [vmem:[#allocation2 + $0xe8] sm:$0xff]
          %v1103 = vld [vmem:[#allocation2 + $0xf0] sm:$0xff]
          %v1104 = vld [vmem:[#allocation2 + $0xf8] sm:$0xff]
          %v1105 = vld [vmem:[%s3] sm:$0x3]
          %v1107 = vlaneseq
          %v1108 = vshrl.u32 %v1107, 7
          %v1109 = vsub.s32 0, %v1108
          %v1110 = vrot.slane %v1105, %v1109
          %v1111 = vlaneseq
          %v1112 = vshrl.u32 %v1111, 7
          %v1113 = vsub.s32 1, %v1112
          %v1114 = vrot.slane %v1105, %v1113
          %v1117 = vadd.f32 %v1073, %v1110
          %v1118 = vadd.f32 %v1074, %v1114
          %v1119 = vadd.f32 %v1075, %v1110
          %v1120 = vadd.f32 %v1076, %v1114
          %v1121 = vadd.f32 %v1077, %v1110
          %v1122 = vadd.f32 %v1078, %v1114
          %v1123 = vadd.f32 %v1079, %v1110
          %v1124 = vadd.f32 %v1080, %v1114
          %v1125 = vadd.f32 %v1081, %v1110
          %v1126 = vadd.f32 %v1082, %v1114
          %v1127 = vadd.f32 %v1083, %v1110
          %v1128 = vadd.f32 %v1084, %v1114
          %v1129 = vadd.f32 %v1085, %v1110
          %v1130 = vadd.f32 %v1086, %v1114
          %v1131 = vadd.f32 %v1087, %v1110
          %v1132 = vadd.f32 %v1088, %v1114
          %v1133 = vadd.f32 %v1089, %v1110
          %v1134 = vadd.f32 %v1090, %v1114
          %v1135 = vadd.f32 %v1091, %v1110
          %v1136 = vadd.f32 %v1092, %v1114
          %v1137 = vadd.f32 %v1093, %v1110
          %v1138 = vadd.f32 %v1094, %v1114
          %v1139 = vadd.f32 %v1095, %v1110
          %v1140 = vadd.f32 %v1096, %v1114
          %v1141 = vadd.f32 %v1097, %v1110
          %v1142 = vadd.f32 %v1098, %v1114
          %v1143 = vadd.f32 %v1099, %v1110
          %v1144 = vadd.f32 %v1100, %v1114
          %v1145 = vadd.f32 %v1101, %v1110
          %v1146 = vadd.f32 %v1102, %v1114
          %v1147 = vadd.f32 %v1103, %v1110
          %v1148 = vadd.f32 %v1104, %v1114
          %v1149 = vmax.f32 %v1117, 0.0
          %v1150 = vmax.f32 %v1118, 0.0
          %v1151 = vmax.f32 %v1119, 0.0
          %v1152 = vmax.f32 %v1120, 0.0
          %v1153 = vmax.f32 %v1121, 0.0
          %v1154 = vmax.f32 %v1122, 0.0
          %v1155 = vmax.f32 %v1123, 0.0
          %v1156 = vmax.f32 %v1124, 0.0
          %v1157 = vmax.f32 %v1125, 0.0
          %v1158 = vmax.f32 %v1126, 0.0
          %v1159 = vmax.f32 %v1127, 0.0
          %v1160 = vmax.f32 %v1128, 0.0
          %v1161 = vmax.f32 %v1129, 0.0
          %v1162 = vmax.f32 %v1130, 0.0
          %v1163 = vmax.f32 %v1131, 0.0
          %v1164 = vmax.f32 %v1132, 0.0
          %v1165 = vmax.f32 %v1133, 0.0
          %v1166 = vmax.f32 %v1134, 0.0
          %v1167 = vmax.f32 %v1135, 0.0
          %v1168 = vmax.f32 %v1136, 0.0
          %v1169 = vmax.f32 %v1137, 0.0
          %v1170 = vmax.f32 %v1138, 0.0
          %v1171 = vmax.f32 %v1139, 0.0
          %v1172 = vmax.f32 %v1140, 0.0
          %v1173 = vmax.f32 %v1141, 0.0
          %v1174 = vmax.f32 %v1142, 0.0
          %v1175 = vmax.f32 %v1143, 0.0
          %v1176 = vmax.f32 %v1144, 0.0
          %v1177 = vmax.f32 %v1145, 0.0
          %v1178 = vmax.f32 %v1146, 0.0
          %v1179 = vmax.f32 %v1147, 0.0
          %v1180 = vmax.f32 %v1148, 0.0
          %v1181 = vmul.f32 %v1150, 0.5
          %v1182 = vmul.f32 %v1152, 0.5
          %v1183 = vmul.f32 %v1154, 0.5
          %v1184 = vmul.f32 %v1156, 0.5
          %v1185 = vmul.f32 %v1158, 0.5
          %v1186 = vmul.f32 %v1160, 0.5
          %v1187 = vmul.f32 %v1162, 0.5
          %v1188 = vmul.f32 %v1164, 0.5
          %v1189 = vmul.f32 %v1166, 0.5
          %v1190 = vmul.f32 %v1168, 0.5
          %v1191 = vmul.f32 %v1170, 0.5
          %v1192 = vmul.f32 %v1172, 0.5
          %v1193 = vmul.f32 %v1174, 0.5
          %v1194 = vmul.f32 %v1176, 0.5
          %v1195 = vmul.f32 %v1178, 0.5
          %v1196 = vmul.f32 %v1180, 0.5
          %v1197 = vmul.f32 %v1181, 1.442695
          %v1198 = vpow.pop %v1197
          %v1199 = vmul.f32 %v1182, 1.442695
          %v1200 = vpow.pop %v1199
          %v1201 = vmul.f32 %v1183, 1.442695
          %v1202 = vpow.pop %v1201
          %v1203 = vmul.f32 %v1184, 1.442695
          %v1204 = vpow.pop %v1203
          %v1205 = vmul.f32 %v1185, 1.442695
          %v1206 = vpow.pop %v1205
          %v1207 = vmul.f32 %v1186, 1.442695
          %v1208 = vpow.pop %v1207
          %v1209 = vmul.f32 %v1187, 1.442695
          %v1210 = vpow.pop %v1209
          %v1211 = vmul.f32 %v1188, 1.442695
          %v1212 = vpow.pop %v1211
          %v1213 = vmul.f32 %v1189, 1.442695
          %v1214 = vpow.pop %v1213
          %v1215 = vmul.f32 %v1190, 1.442695
          %v1216 = vpow.pop %v1215
          %v1217 = vmul.f32 %v1191, 1.442695
          %v1218 = vpow.pop %v1217
          %v1219 = vmul.f32 %v1192, 1.442695
          %v1220 = vpow.pop %v1219
          %v1221 = vmul.f32 %v1193, 1.442695
          %v1222 = vpow.pop %v1221
          %v1223 = vmul.f32 %v1194, 1.442695
          %v1224 = vpow.pop %v1223
          %v1225 = vmul.f32 %v1195, 1.442695
          %v1226 = vpow.pop %v1225
          %v1227 = vmul.f32 %v1196, 1.442695
          %v1228 = vpow.pop %v1227
          %1229 = vst [vmem:[%s456] sm:$0xff] %v1149
          %1230 = vst [vmem:[%s456 + $0x8] sm:$0xff] %v1151
          %1231 = vst [vmem:[%s456 + $0x10] sm:$0xff] %v1153
          %1232 = vst [vmem:[%s456 + $0x18] sm:$0xff] %v1155
          %1233 = vst [vmem:[%s456 + $0x20] sm:$0xff] %v1157
          %1234 = vst [vmem:[%s456 + $0x28] sm:$0xff] %v1159
          %1235 = vst [vmem:[%s456 + $0x30] sm:$0xff] %v1161
          %1236 = vst [vmem:[%s456 + $0x38] sm:$0xff] %v1163
          %1237 = vst [vmem:[%s456 + $0x40] sm:$0xff] %v1165
          %1238 = vst [vmem:[%s456 + $0x48] sm:$0xff] %v1167
          %1239 = vst [vmem:[%s456 + $0x50] sm:$0xff] %v1169
          %1240 = vst [vmem:[%s456 + $0x58] sm:$0xff] %v1171
          %1241 = vst [vmem:[%s456 + $0x60] sm:$0xff] %v1173
          %1242 = vst [vmem:[%s456 + $0x68] sm:$0xff] %v1175
          %1243 = vst [vmem:[%s456 + $0x70] sm:$0xff] %v1177
          %1244 = vst [vmem:[%s456 + $0x78] sm:$0xff] %v1179
          %1245 = vst [vmem:[%s462] sm:$0xff] %v1198
          %1246 = vst [vmem:[%s462 + $0x8] sm:$0xff] %v1200
          %1247 = vst [vmem:[%s462 + $0x10] sm:$0xff] %v1202
          %1248 = vst [vmem:[%s462 + $0x18] sm:$0xff] %v1204
          %1249 = vst [vmem:[%s462 + $0x20] sm:$0xff] %v1206
          %1250 = vst [vmem:[%s462 + $0x28] sm:$0xff] %v1208
          %1251 = vst [vmem:[%s462 + $0x30] sm:$0xff] %v1210
          %1252 = vst [vmem:[%s462 + $0x38] sm:$0xff] %v1212
          %1253 = vst [vmem:[%s462 + $0x40] sm:$0xff] %v1214
          %1254 = vst [vmem:[%s462 + $0x48] sm:$0xff] %v1216
          %1255 = vst [vmem:[%s462 + $0x50] sm:$0xff] %v1218
          %1256 = vst [vmem:[%s462 + $0x58] sm:$0xff] %v1220
          %1257 = vst [vmem:[%s462 + $0x60] sm:$0xff] %v1222
          %1258 = vst [vmem:[%s462 + $0x68] sm:$0xff] %v1224
          %1259 = vst [vmem:[%s462 + $0x70] sm:$0xff] %v1226
          %1260 = vst [vmem:[%s462 + $0x78] sm:$0xff] %v1228
          %v1261 = vld [vmem:[%s450] sm:$0xff]
          %v1262 = vld [vmem:[%s450 + $0x8] sm:$0xff]
          %v1263 = vld [vmem:[%s450 + $0x10] sm:$0xff]
          %v1264 = vld [vmem:[%s450 + $0x18] sm:$0xff]
          %v1265 = vld [vmem:[%s450 + $0x20] sm:$0xff]
          %v1266 = vld [vmem:[%s450 + $0x28] sm:$0xff]
          %v1267 = vld [vmem:[%s450 + $0x30] sm:$0xff]
          %v1268 = vld [vmem:[%s450 + $0x38] sm:$0xff]
          %v1269 = vld [vmem:[%s450 + $0x40] sm:$0xff]
          %v1270 = vld [vmem:[%s450 + $0x48] sm:$0xff]
          %v1271 = vld [vmem:[%s450 + $0x50] sm:$0xff]
          %v1272 = vld [vmem:[%s450 + $0x58] sm:$0xff]
          %v1273 = vld [vmem:[%s450 + $0x60] sm:$0xff]
          %v1274 = vld [vmem:[%s450 + $0x68] sm:$0xff]
          %v1275 = vld [vmem:[%s450 + $0x70] sm:$0xff]
          %v1276 = vld [vmem:[%s450 + $0x78] sm:$0xff]
          %v1277 = vmul.f32 %v1198, %v1261
          %v1278 = vmul.f32 %v1200, %v1262
          %v1279 = vmul.f32 %v1202, %v1263
          %v1280 = vmul.f32 %v1204, %v1264
          %v1281 = vmul.f32 %v1206, %v1265
          %v1282 = vmul.f32 %v1208, %v1266
          %v1283 = vmul.f32 %v1210, %v1267
          %v1284 = vmul.f32 %v1212, %v1268
          %v1285 = vmul.f32 %v1214, %v1269
          %v1286 = vmul.f32 %v1216, %v1270
          %v1287 = vmul.f32 %v1218, %v1271
          %v1288 = vmul.f32 %v1220, %v1272
          %v1289 = vmul.f32 %v1222, %v1273
          %v1290 = vmul.f32 %v1224, %v1274
          %v1291 = vmul.f32 %v1226, %v1275
          %v1292 = vmul.f32 %v1228, %v1276
          %v1293 = vadd.f32 %v1149, %v1277
          %v1294 = vadd.f32 %v1151, %v1278
          %v1295 = vadd.f32 %v1153, %v1279
          %v1296 = vadd.f32 %v1155, %v1280
          %v1297 = vadd.f32 %v1157, %v1281
          %v1298 = vadd.f32 %v1159, %v1282
          %v1299 = vadd.f32 %v1161, %v1283
          %v1300 = vadd.f32 %v1163, %v1284
          %v1301 = vadd.f32 %v1165, %v1285
          %v1302 = vadd.f32 %v1167, %v1286
          %v1303 = vadd.f32 %v1169, %v1287
          %v1304 = vadd.f32 %v1171, %v1288
          %v1305 = vadd.f32 %v1173, %v1289
          %v1306 = vadd.f32 %v1175, %v1290
          %v1307 = vadd.f32 %v1177, %v1291
          %v1308 = vadd.f32 %v1179, %v1292
          %1309 = vst [vmem:[%s468] sm:$0xff] %v1293
          %1310 = vst [vmem:[%s468 + $0x8] sm:$0xff] %v1294
          %1311 = vst [vmem:[%s468 + $0x10] sm:$0xff] %v1295
          %1312 = vst [vmem:[%s468 + $0x18] sm:$0xff] %v1296
          %1313 = vst [vmem:[%s468 + $0x20] sm:$0xff] %v1297
          %1314 = vst [vmem:[%s468 + $0x28] sm:$0xff] %v1298
          %1315 = vst [vmem:[%s468 + $0x30] sm:$0xff] %v1299
          %1316 = vst [vmem:[%s468 + $0x38] sm:$0xff] %v1300
          %1317 = vst [vmem:[%s468 + $0x40] sm:$0xff] %v1301
          %1318 = vst [vmem:[%s468 + $0x48] sm:$0xff] %v1302
          %1319 = vst [vmem:[%s468 + $0x50] sm:$0xff] %v1303
          %1320 = vst [vmem:[%s468 + $0x58] sm:$0xff] %v1304
          %1321 = vst [vmem:[%s468 + $0x60] sm:$0xff] %v1305
          %1322 = vst [vmem:[%s468 + $0x68] sm:$0xff] %v1306
          %1323 = vst [vmem:[%s468 + $0x70] sm:$0xff] %v1307
          %1324 = vst [vmem:[%s468 + $0x78] sm:$0xff] %v1308
        $region89: #{_vgae_forward_prepped.3} parent=76 // pred_fallthru
          _
        %s1325 = smul.u32 16, %s23
        %p1326 = scmp.lt.s32.totalorder %s1325, 47
        %s1327 = scalar_select %p1326, %s1325, 47
        %s1328 = smul.addr %s1327, 8
        %s1329 = scalar_lea.vmem %s5, %s1328
        %s1330 = smul.u32 16, %s23
        %p1331 = scmp.lt.s32.totalorder %s1330, 47
        %s1332 = scalar_select %p1331, %s1330, 47
        %s1333 = smul.addr %s1332, 8
        %s1334 = scalar_lea.vmem %s6, %s1333
        %s1335 = smul.u32 16, %s23
        %p1336 = scmp.lt.s32.totalorder %s1335, 47
        %s1337 = scalar_select %p1336, %s1335, 47
        %s1338 = smul.addr %s1337, 8
        %s1339 = scalar_lea.vmem %s7, %s1338
        // Predicated region
        $region90: #{_vgae_forward_prepped.3} parent=76 // pred_check
          %p1340 = pneg %p171
        $region91: #{_vgae_forward_prepped.3} parent=76 // pred_check_branch
          %1342 = sbr.rel (%p1340) target = $region93
        $region92: #{_vgae_forward_prepped.3} parent=76 // pred_region
          %s1343 = smul.u32 16, %s23
        $region93: #{_vgae_forward_prepped.3} parent=76 // pred_fallthru
          _
        // Predicated region
        $region94: #{_vgae_forward_prepped.3} parent=76 // pred_check
          %p1344 = pneg %p197
        $region95: #{_vgae_forward_prepped.3} parent=76 // pred_check_branch
          %1346 = sbr.rel (%p1344) target = $region97
        $region96: #{_vgae_forward_prepped.3} parent=76 // pred_region
          %s1347 = smul.u32 16, %s23
        $region97: #{_vgae_forward_prepped.3} parent=76 // pred_fallthru
          _
        // Predicated region
        $region98: #{_vgae_forward_prepped.3} parent=76 // pred_check
          %p1348 = pneg %p223
        $region99: #{_vgae_forward_prepped.3} parent=76 // pred_check_branch
          %1350 = sbr.rel (%p1348) target = $region101
        $region100: #{_vgae_forward_prepped.3} parent=76 // pred_region
          %s1351 = smul.u32 16, %s23
        $region101: #{_vgae_forward_prepped.3} parent=76 // pred_fallthru
          _
      $region77: #{_vgae_forward_prepped.3} parent=5 // pred_fallthru
        _
      %p1352 = scmp.le.s32.totalorder 2, %s14
      // Predicated region
      $region102: #{_vgae_forward_prepped.3} parent=5 // pred_check
        %p1353 = pneg %p1352
      $region103: #{_vgae_forward_prepped.3} parent=5 // pred_check_branch
        %1355 = sbr.rel (%p1353) target = $region105
      $region104: #{_vgae_forward_prepped.3} parent=5 // pred_region
        %s1356 = ssub.s32 %s14, 2
        // Predicated region
        $region106: #{_vgae_forward_prepped.3} parent=104 // pred_check
          %p1357 = pneg %p177
        $region107: #{_vgae_forward_prepped.3} parent=104 // pred_check_branch
          %1359 = sbr.rel (%p1357) target = $region109
        $region108: #{_vgae_forward_prepped.3} parent=104 // pred_region
          %s1360 = smul.u32 16, %s25
          %p1361 = scmp.lt.s32.totalorder %s1360, 47
          %s1362 = scalar_select %p1361, %s1360, 47
          %s1363 = smul.addr %s1362, 8
          %s1364 = scalar_lea.vmem %s5, %s1363
        $region109: #{_vgae_forward_prepped.3} parent=104 // pred_fallthru
          _
        // Predicated region
        $region110: #{_vgae_forward_prepped.3} parent=104 // pred_check
          %p1365 = pneg %p203
        $region111: #{_vgae_forward_prepped.3} parent=104 // pred_check_branch
          %1367 = sbr.rel (%p1365) target = $region113
        $region112: #{_vgae_forward_prepped.3} parent=104 // pred_region
          %s1368 = smul.u32 16, %s25
          %p1369 = scmp.lt.s32.totalorder %s1368, 47
          %s1370 = scalar_select %p1369, %s1368, 47
          %s1371 = smul.addr %s1370, 8
          %s1372 = scalar_lea.vmem %s6, %s1371
        $region113: #{_vgae_forward_prepped.3} parent=104 // pred_fallthru
          _
        // Predicated region
        $region114: #{_vgae_forward_prepped.3} parent=104 // pred_check
          %p1373 = pneg %p229
        $region115: #{_vgae_forward_prepped.3} parent=104 // pred_check_branch
          %1375 = sbr.rel (%p1373) target = $region117
        $region116: #{_vgae_forward_prepped.3} parent=104 // pred_region
          %s1376 = smul.u32 16, %s25
          %p1377 = scmp.lt.s32.totalorder %s1376, 47
          %s1378 = scalar_select %p1377, %s1376, 47
          %s1379 = smul.addr %s1378, 8
          %s1380 = scalar_lea.vmem %s7, %s1379
        $region117: #{_vgae_forward_prepped.3} parent=104 // pred_fallthru
          _
      $region105: #{_vgae_forward_prepped.3} parent=5 // pred_fallthru
        _
    $region6: #{_vgae_forward_prepped.3} parent=1 // loop_footer
      %s18 = sadd.s32 1, %s14
    $region7: #{_vgae_forward_prepped.3} parent=1 // loop_footer_branch
      %13 = sbr.rel target = $region3
    $region8: #{_vgae_forward_prepped.3} parent=1 // loop_exit
      _

</llo_original>
